<compile_context>
chip_gen: v7x
topology: tpu7x:2x2x1
jax: 0.10.0
libtpu: 0.0.40
codegen_flags: <defaults>
</compile_context>

<pallas_src>
import jax
import jax.numpy as jnp
from jax.experimental import pallas as pl
from jax.experimental.pallas import tpu as pltpu


# ----------------------------- in-kernel math -------------------------------

def _erf_approx(x):
    # Abramowitz & Stegun 7.1.26 — max abs error ~1.5e-7 (fp32-level exact).
    a1, a2, a3, a4, a5 = 0.254829592, -0.284496736, 1.421413741, -1.453152027, 1.061405429
    p = 0.3275911
    sgn = jnp.where(x >= 0.0, 1.0, -1.0)
    ax = jnp.abs(x)
    t = pl.reciprocal(1.0 + p * ax, approx=False)
    poly = ((((a5 * t + a4) * t + a3) * t + a2) * t + a1) * t
    return sgn * (1.0 - poly * jnp.exp(-ax * ax))


def _gelu(x):
    # exact GELU: 0.5 * x * (1 + erf(x / sqrt(2)))  (nn.GELU() default)
    return 0.5 * x * (1.0 + _erf_approx(x * 0.7071067811865476))


# ------------------------------ fused kernel ---------------------------------

def _se_kernel(x_ref, w1_ref, b1_ref, w2_ref, b2_ref, o_ref):
    """One batch element per grid step.

    x_ref:  (HW, C)  rows = spatial positions, lanes = channels
    w1_ref: (hidden, C)   first Linear weight with 1/HW (avg-pool) folded in
    b1_ref: (1, hidden)
    w2_ref: (hidden, C)   second Linear weight, transposed
    b2_ref: (1, C)
    o_ref:  (HW, C)
    """
    x = x_ref[...].astype(jnp.float32)
    C = x.shape[1]

    # squeeze: global average pool (the 1/HW factor is folded into w1)
    pooled = jnp.sum(x, axis=0, keepdims=True)                     # (1, C)

    # excitation MLP: hidden dim is tiny (C // ratio) -> unrolled broadcast/reduce
    hidden = w1_ref.shape[0]
    acc = jnp.zeros((1, C), jnp.float32)
    for j in range(hidden):
        hj = jnp.sum(pooled * w1_ref[j, :], axis=1, keepdims=True) + b1_ref[:, j:j + 1]
        hj = _gelu(hj)                                             # (1, 1)
        acc = acc + hj * w2_ref[j, :]                              # (1, C)

    # sigmoid gate, then scale every spatial position of this batch element
    gate = pl.reciprocal(1.0 + jnp.exp(-(acc + b2_ref[...])), approx=False)
    o_ref[...] = (x * gate).astype(o_ref.dtype)


# ------------------------------ host wrapper ----------------------------------

def se_forward(params, x):
    """x is NCHW (PyTorch layout). Returns NCHW."""
    B, C, H, W = x.shape
    hidden = params["w1"].shape[0]
    HW = H * W

    # --- API-boundary layout only: NCHW -> rows=(b,h,w), lanes=c
    x_rows = jnp.transpose(x, (0, 2, 3, 1)).reshape(B * HW, C)

    # --- one-time weight folding (const-folded / fused under jit)
    w1f = params["w1"] * (1.0 / HW)                    # (hidden, C), avg-pool folded in
    b1 = params["b1"].reshape(1, hidden)
    w2t = jnp.transpose(params["w2"])                  # (hidden, C)
    b2 = params["b2"].reshape(1, C)

    out_rows = pl.pallas_call(
        _se_kernel,
        out_shape=jax.ShapeDtypeStruct((B * HW, C), x.dtype),
        grid=(B,),
        in_specs=[
            pl.BlockSpec((HW, C), lambda b: (b, 0)),          # x: one batch / step
            pl.BlockSpec((hidden, C), lambda b: (0, 0)),      # w1 (resident)
            pl.BlockSpec((1, hidden), lambda b: (0, 0)),      # b1
            pl.BlockSpec((hidden, C), lambda b: (0, 0)),      # w2^T
            pl.BlockSpec((1, C), lambda b: (0, 0)),           # b2
        ],
        out_specs=pl.BlockSpec((HW, C), lambda b: (b, 0)),    # lane-dense stores
        compiler_params=pltpu.CompilerParams(
            dimension_semantics=("parallel",)),
    )(x_rows, w1f, b1, w2t, b2)

    # --- API boundary: back to NCHW (one XLA transpose)
    return jnp.transpose(out_rows.reshape(B, H, W, C), (0, 3, 1, 2))


# ----------------------- pure-JAX (XLA) reference ----------------------------

def reference_forward(params, x):
    pooled = jnp.mean(x, axis=(2, 3))                                   # (B, C)
    h = jax.nn.gelu(pooled @ params["w1"].T + params["b1"], approximate=False)
    s = jax.nn.sigmoid(h @ params["w2"].T + params["b2"])               # (B, C)
    return x * s[:, :, None, None]


# ------------------------------- params --------------------------------------

def init_params(key, channel, ratio=16):
    hidden = channel // ratio
    k1, k2, k3, k4 = jax.random.split(key, 4)
    sc = 0.2
    return dict(
        w1=sc * jax.random.normal(k1, (hidden, channel), jnp.float32),  # Linear 1
        b1=sc * jax.random.normal(k2, (hidden,), jnp.float32),
        w2=sc * jax.random.normal(k3, (channel, hidden), jnp.float32),  # Linear 2
        b2=sc * jax.random.normal(k4, (channel,), jnp.float32),
    )


# --------------------------------- main ---------------------------------------

if __name__ == "__main__":
    key = jax.random.PRNGKey(0)
    k_param, k_in = jax.random.split(key, 2)

    B, C, H, W = 2, 128, 16, 16          # C//16 == 8 (SE hidden dim), lane-dense C
    params = init_params(k_param, C, ratio=16)
    x = jax.random.normal(k_in, (B, C, H, W), jnp.float32)

    fwd = jax.jit(se_forward)
    out = jax.block_until_ready(fwd(params, x))

    ref = jax.block_until_ready(reference_forward(params, x))

    assert out.shape == ref.shape == (B, C, H, W), (out.shape, ref.shape)
    max_err = float(jnp.max(jnp.abs(out - ref)))
    if not bool(jnp.allclose(out, ref, atol=2e-3, rtol=2e-3)):
        raise AssertionError(f"Pallas output mismatch vs reference, max_err={max_err}")

    print("KERNEL_OK")
</pallas_src>

<mosaic_0001>
module attributes {stable_mosaic.version = 11 : i64} {
  func.func @_se_kernel(%arg0: i32, %arg1: memref<256x128xf32, #tpu.memory_space<vmem>>, %arg2: memref<8x128xf32, #tpu.memory_space<vmem>>, %arg3: memref<1x8xf32, #tpu.memory_space<vmem>>, %arg4: memref<8x128xf32, #tpu.memory_space<vmem>>, %arg5: memref<1x128xf32, #tpu.memory_space<vmem>>, %arg6: memref<256x128xf32, #tpu.memory_space<vmem>>) attributes {dimension_semantics = [#tpu.dimension_semantics<parallel>], iteration_bounds = array<i64: 2>, scalar_prefetch = 0 : i64, scratch_operands = 0 : i64, tpu.core_type = #tpu.core_type<tc>, window_params = [{transform_indices = @transform_0, window_bounds = array<i64: 256, 128>}, {pipeline_mode = #tpu.pipeline_mode<synchronous>, transform_indices = @transform_1, window_bounds = array<i64: 8, 128>}, {pipeline_mode = #tpu.pipeline_mode<synchronous>, transform_indices = @transform_2, window_bounds = array<i64: 1, 8>}, {pipeline_mode = #tpu.pipeline_mode<synchronous>, transform_indices = @transform_3, window_bounds = array<i64: 8, 128>}, {pipeline_mode = #tpu.pipeline_mode<synchronous>, transform_indices = @transform_4, window_bounds = array<i64: 1, 128>}, {transform_indices = @transform_5, window_bounds = array<i64: 256, 128>}]} {
    %c0 = arith.constant 0 : index
    %c0_0 = arith.constant 0 : index
    %0 = vector.load %arg1[%c0, %c0_0] : memref<256x128xf32, #tpu.memory_space<vmem>>, vector<256x128xf32>
    %cst = arith.constant dense<0.000000e+00> : vector<128xf32>
    %1 = vector.multi_reduction <add>, %0, %cst [0] : vector<256x128xf32> to vector<128xf32>
    %2 = vector.shape_cast %1 : vector<128xf32> to vector<1x128xf32>
    %cst_1 = arith.constant 0.000000e+00 : f32
    %3 = vector.broadcast %cst_1 : f32 to vector<1x128xf32>
    %c0_2 = arith.constant 0 : index
    %c0_3 = arith.constant 0 : index
    %4 = vector.load %arg2[%c0_2, %c0_3] : memref<8x128xf32, #tpu.memory_space<vmem>>, vector<1x128xf32>
    %5 = vector.shape_cast %4 : vector<1x128xf32> to vector<128xf32>
    %6 = vector.shape_cast %5 : vector<128xf32> to vector<1x128xf32>
    %7 = arith.mulf %2, %6 : vector<1x128xf32>
    %cst_4 = arith.constant dense<0.000000e+00> : vector<1xf32>
    %8 = vector.multi_reduction <add>, %7, %cst_4 [1] : vector<1x128xf32> to vector<1xf32>
    %9 = vector.shape_cast %8 : vector<1xf32> to vector<1x1xf32>
    %c0_5 = arith.constant 0 : index
    %c0_6 = arith.constant 0 : index
    %10 = vector.load %arg3[%c0_5, %c0_6] : memref<1x8xf32, #tpu.memory_space<vmem>>, vector<1x1xf32>
    %11 = arith.addf %9, %10 : vector<1x1xf32>
    %cst_7 = arith.constant 5.000000e-01 : f32
    %12 = vector.broadcast %cst_7 : f32 to vector<1x1xf32>
    %13 = arith.mulf %12, %11 : vector<1x1xf32>
    %cst_8 = arith.constant 0.707106769 : f32
    %14 = vector.broadcast %cst_8 : f32 to vector<1x1xf32>
    %15 = arith.mulf %11, %14 : vector<1x1xf32>
    %cst_9 = arith.constant 0.000000e+00 : f32
    %16 = vector.broadcast %cst_9 : f32 to vector<1x1xf32>
    %17 = arith.cmpf oge, %15, %16 : vector<1x1xf32>
    %cst_10 = arith.constant 1.000000e+00 : f32
    %cst_11 = arith.constant -1.000000e+00 : f32
    %18 = vector.broadcast %cst_10 : f32 to vector<1x1xf32>
    %19 = vector.broadcast %cst_11 : f32 to vector<1x1xf32>
    %20 = arith.select %17, %18, %19 : vector<1x1xi1>, vector<1x1xf32>
    %21 = math.absf %15 : vector<1x1xf32>
    %cst_12 = arith.constant 0.327591091 : f32
    %22 = vector.broadcast %cst_12 : f32 to vector<1x1xf32>
    %23 = arith.mulf %22, %21 : vector<1x1xf32>
    %cst_13 = arith.constant 1.000000e+00 : f32
    %24 = vector.broadcast %cst_13 : f32 to vector<1x1xf32>
    %25 = arith.addf %24, %23 : vector<1x1xf32>
    %26 = tpu.reciprocal %25 : vector<1x1xf32> -> vector<1x1xf32>
    %cst_14 = arith.constant 1.06140542 : f32
    %27 = vector.broadcast %cst_14 : f32 to vector<1x1xf32>
    %28 = arith.mulf %27, %26 : vector<1x1xf32>
    %cst_15 = arith.constant -1.45315206 : f32
    %29 = vector.broadcast %cst_15 : f32 to vector<1x1xf32>
    %30 = arith.addf %28, %29 : vector<1x1xf32>
    %31 = arith.mulf %30, %26 : vector<1x1xf32>
    %cst_16 = arith.constant 1.42141378 : f32
    %32 = vector.broadcast %cst_16 : f32 to vector<1x1xf32>
    %33 = arith.addf %31, %32 : vector<1x1xf32>
    %34 = arith.mulf %33, %26 : vector<1x1xf32>
    %cst_17 = arith.constant -0.284496725 : f32
    %35 = vector.broadcast %cst_17 : f32 to vector<1x1xf32>
    %36 = arith.addf %34, %35 : vector<1x1xf32>
    %37 = arith.mulf %36, %26 : vector<1x1xf32>
    %cst_18 = arith.constant 0.254829586 : f32
    %38 = vector.broadcast %cst_18 : f32 to vector<1x1xf32>
    %39 = arith.addf %37, %38 : vector<1x1xf32>
    %40 = arith.mulf %39, %26 : vector<1x1xf32>
    %cst_19 = arith.constant 0.000000e+00 : f32
    %41 = vector.broadcast %cst_19 : f32 to vector<1x1xf32>
    %42 = arith.subf %41, %21 : vector<1x1xf32>
    %43 = arith.mulf %42, %21 : vector<1x1xf32>
    %44 = math.exp %43 : vector<1x1xf32>
    %45 = arith.mulf %40, %44 : vector<1x1xf32>
    %cst_20 = arith.constant 1.000000e+00 : f32
    %46 = vector.broadcast %cst_20 : f32 to vector<1x1xf32>
    %47 = arith.subf %46, %45 : vector<1x1xf32>
    %48 = arith.mulf %20, %47 : vector<1x1xf32>
    %cst_21 = arith.constant 1.000000e+00 : f32
    %49 = vector.broadcast %cst_21 : f32 to vector<1x1xf32>
    %50 = arith.addf %49, %48 : vector<1x1xf32>
    %51 = arith.mulf %13, %50 : vector<1x1xf32>
    %c0_22 = arith.constant 0 : index
    %c0_23 = arith.constant 0 : index
    %52 = vector.load %arg4[%c0_22, %c0_23] : memref<8x128xf32, #tpu.memory_space<vmem>>, vector<1x128xf32>
    %53 = vector.shape_cast %52 : vector<1x128xf32> to vector<128xf32>
    %54 = vector.shape_cast %53 : vector<128xf32> to vector<1x128xf32>
    %55 = vector.broadcast %51 : vector<1x1xf32> to vector<1x128xf32>
    %56 = arith.mulf %55, %54 : vector<1x128xf32>
    %57 = arith.addf %3, %56 : vector<1x128xf32>
    %c1 = arith.constant 1 : index
    %c0_24 = arith.constant 0 : index
    %58 = vector.load %arg2[%c1, %c0_24] : memref<8x128xf32, #tpu.memory_space<vmem>>, vector<1x128xf32>
    %59 = vector.shape_cast %58 : vector<1x128xf32> to vector<128xf32>
    %60 = vector.shape_cast %59 : vector<128xf32> to vector<1x128xf32>
    %61 = arith.mulf %2, %60 : vector<1x128xf32>
    %cst_25 = arith.constant dense<0.000000e+00> : vector<1xf32>
    %62 = vector.multi_reduction <add>, %61, %cst_25 [1] : vector<1x128xf32> to vector<1xf32>
    %63 = vector.shape_cast %62 : vector<1xf32> to vector<1x1xf32>
    %c0_26 = arith.constant 0 : index
    %c1_27 = arith.constant 1 : index
    %64 = vector.load %arg3[%c0_26, %c1_27] : memref<1x8xf32, #tpu.memory_space<vmem>>, vector<1x1xf32>
    %65 = arith.addf %63, %64 : vector<1x1xf32>
    %cst_28 = arith.constant 5.000000e-01 : f32
    %66 = vector.broadcast %cst_28 : f32 to vector<1x1xf32>
    %67 = arith.mulf %66, %65 : vector<1x1xf32>
    %cst_29 = arith.constant 0.707106769 : f32
    %68 = vector.broadcast %cst_29 : f32 to vector<1x1xf32>
    %69 = arith.mulf %65, %68 : vector<1x1xf32>
    %cst_30 = arith.constant 0.000000e+00 : f32
    %70 = vector.broadcast %cst_30 : f32 to vector<1x1xf32>
    %71 = arith.cmpf oge, %69, %70 : vector<1x1xf32>
    %cst_31 = arith.constant 1.000000e+00 : f32
    %cst_32 = arith.constant -1.000000e+00 : f32
    %72 = vector.broadcast %cst_31 : f32 to vector<1x1xf32>
    %73 = vector.broadcast %cst_32 : f32 to vector<1x1xf32>
    %74 = arith.select %71, %72, %73 : vector<1x1xi1>, vector<1x1xf32>
    %75 = math.absf %69 : vector<1x1xf32>
    %cst_33 = arith.constant 0.327591091 : f32
    %76 = vector.broadcast %cst_33 : f32 to vector<1x1xf32>
    %77 = arith.mulf %76, %75 : vector<1x1xf32>
    %cst_34 = arith.constant 1.000000e+00 : f32
    %78 = vector.broadcast %cst_34 : f32 to vector<1x1xf32>
    %79 = arith.addf %78, %77 : vector<1x1xf32>
    %80 = tpu.reciprocal %79 : vector<1x1xf32> -> vector<1x1xf32>
    %cst_35 = arith.constant 1.06140542 : f32
    %81 = vector.broadcast %cst_35 : f32 to vector<1x1xf32>
    %82 = arith.mulf %81, %80 : vector<1x1xf32>
    %cst_36 = arith.constant -1.45315206 : f32
    %83 = vector.broadcast %cst_36 : f32 to vector<1x1xf32>
    %84 = arith.addf %82, %83 : vector<1x1xf32>
    %85 = arith.mulf %84, %80 : vector<1x1xf32>
    %cst_37 = arith.constant 1.42141378 : f32
    %86 = vector.broadcast %cst_37 : f32 to vector<1x1xf32>
    %87 = arith.addf %85, %86 : vector<1x1xf32>
    %88 = arith.mulf %87, %80 : vector<1x1xf32>
    %cst_38 = arith.constant -0.284496725 : f32
    %89 = vector.broadcast %cst_38 : f32 to vector<1x1xf32>
    %90 = arith.addf %88, %89 : vector<1x1xf32>
    %91 = arith.mulf %90, %80 : vector<1x1xf32>
    %cst_39 = arith.constant 0.254829586 : f32
    %92 = vector.broadcast %cst_39 : f32 to vector<1x1xf32>
    %93 = arith.addf %91, %92 : vector<1x1xf32>
    %94 = arith.mulf %93, %80 : vector<1x1xf32>
    %cst_40 = arith.constant 0.000000e+00 : f32
    %95 = vector.broadcast %cst_40 : f32 to vector<1x1xf32>
    %96 = arith.subf %95, %75 : vector<1x1xf32>
    %97 = arith.mulf %96, %75 : vector<1x1xf32>
    %98 = math.exp %97 : vector<1x1xf32>
    %99 = arith.mulf %94, %98 : vector<1x1xf32>
    %cst_41 = arith.constant 1.000000e+00 : f32
    %100 = vector.broadcast %cst_41 : f32 to vector<1x1xf32>
    %101 = arith.subf %100, %99 : vector<1x1xf32>
    %102 = arith.mulf %74, %101 : vector<1x1xf32>
    %cst_42 = arith.constant 1.000000e+00 : f32
    %103 = vector.broadcast %cst_42 : f32 to vector<1x1xf32>
    %104 = arith.addf %103, %102 : vector<1x1xf32>
    %105 = arith.mulf %67, %104 : vector<1x1xf32>
    %c1_43 = arith.constant 1 : index
    %c0_44 = arith.constant 0 : index
    %106 = vector.load %arg4[%c1_43, %c0_44] : memref<8x128xf32, #tpu.memory_space<vmem>>, vector<1x128xf32>
    %107 = vector.shape_cast %106 : vector<1x128xf32> to vector<128xf32>
    %108 = vector.shape_cast %107 : vector<128xf32> to vector<1x128xf32>
    %109 = vector.broadcast %105 : vector<1x1xf32> to vector<1x128xf32>
    %110 = arith.mulf %109, %108 : vector<1x128xf32>
    %111 = arith.addf %57, %110 : vector<1x128xf32>
    %c2 = arith.constant 2 : index
    %c0_45 = arith.constant 0 : index
    %112 = vector.load %arg2[%c2, %c0_45] : memref<8x128xf32, #tpu.memory_space<vmem>>, vector<1x128xf32>
    %113 = vector.shape_cast %112 : vector<1x128xf32> to vector<128xf32>
    %114 = vector.shape_cast %113 : vector<128xf32> to vector<1x128xf32>
    %115 = arith.mulf %2, %114 : vector<1x128xf32>
    %cst_46 = arith.constant dense<0.000000e+00> : vector<1xf32>
    %116 = vector.multi_reduction <add>, %115, %cst_46 [1] : vector<1x128xf32> to vector<1xf32>
    %117 = vector.shape_cast %116 : vector<1xf32> to vector<1x1xf32>
    %c0_47 = arith.constant 0 : index
    %c2_48 = arith.constant 2 : index
    %118 = vector.load %arg3[%c0_47, %c2_48] : memref<1x8xf32, #tpu.memory_space<vmem>>, vector<1x1xf32>
    %119 = arith.addf %117, %118 : vector<1x1xf32>
    %cst_49 = arith.constant 5.000000e-01 : f32
    %120 = vector.broadcast %cst_49 : f32 to vector<1x1xf32>
    %121 = arith.mulf %120, %119 : vector<1x1xf32>
    %cst_50 = arith.constant 0.707106769 : f32
    %122 = vector.broadcast %cst_50 : f32 to vector<1x1xf32>
    %123 = arith.mulf %119, %122 : vector<1x1xf32>
    %cst_51 = arith.constant 0.000000e+00 : f32
    %124 = vector.broadcast %cst_51 : f32 to vector<1x1xf32>
    %125 = arith.cmpf oge, %123, %124 : vector<1x1xf32>
    %cst_52 = arith.constant 1.000000e+00 : f32
    %cst_53 = arith.constant -1.000000e+00 : f32
    %126 = vector.broadcast %cst_52 : f32 to vector<1x1xf32>
    %127 = vector.broadcast %cst_53 : f32 to vector<1x1xf32>
    %128 = arith.select %125, %126, %127 : vector<1x1xi1>, vector<1x1xf32>
    %129 = math.absf %123 : vector<1x1xf32>
    %cst_54 = arith.constant 0.327591091 : f32
    %130 = vector.broadcast %cst_54 : f32 to vector<1x1xf32>
    %131 = arith.mulf %130, %129 : vector<1x1xf32>
    %cst_55 = arith.constant 1.000000e+00 : f32
    %132 = vector.broadcast %cst_55 : f32 to vector<1x1xf32>
    %133 = arith.addf %132, %131 : vector<1x1xf32>
    %134 = tpu.reciprocal %133 : vector<1x1xf32> -> vector<1x1xf32>
    %cst_56 = arith.constant 1.06140542 : f32
    %135 = vector.broadcast %cst_56 : f32 to vector<1x1xf32>
    %136 = arith.mulf %135, %134 : vector<1x1xf32>
    %cst_57 = arith.constant -1.45315206 : f32
    %137 = vector.broadcast %cst_57 : f32 to vector<1x1xf32>
    %138 = arith.addf %136, %137 : vector<1x1xf32>
    %139 = arith.mulf %138, %134 : vector<1x1xf32>
    %cst_58 = arith.constant 1.42141378 : f32
    %140 = vector.broadcast %cst_58 : f32 to vector<1x1xf32>
    %141 = arith.addf %139, %140 : vector<1x1xf32>
    %142 = arith.mulf %141, %134 : vector<1x1xf32>
    %cst_59 = arith.constant -0.284496725 : f32
    %143 = vector.broadcast %cst_59 : f32 to vector<1x1xf32>
    %144 = arith.addf %142, %143 : vector<1x1xf32>
    %145 = arith.mulf %144, %134 : vector<1x1xf32>
    %cst_60 = arith.constant 0.254829586 : f32
    %146 = vector.broadcast %cst_60 : f32 to vector<1x1xf32>
    %147 = arith.addf %145, %146 : vector<1x1xf32>
    %148 = arith.mulf %147, %134 : vector<1x1xf32>
    %cst_61 = arith.constant 0.000000e+00 : f32
    %149 = vector.broadcast %cst_61 : f32 to vector<1x1xf32>
    %150 = arith.subf %149, %129 : vector<1x1xf32>
    %151 = arith.mulf %150, %129 : vector<1x1xf32>
    %152 = math.exp %151 : vector<1x1xf32>
    %153 = arith.mulf %148, %152 : vector<1x1xf32>
    %cst_62 = arith.constant 1.000000e+00 : f32
    %154 = vector.broadcast %cst_62 : f32 to vector<1x1xf32>
    %155 = arith.subf %154, %153 : vector<1x1xf32>
    %156 = arith.mulf %128, %155 : vector<1x1xf32>
    %cst_63 = arith.constant 1.000000e+00 : f32
    %157 = vector.broadcast %cst_63 : f32 to vector<1x1xf32>
    %158 = arith.addf %157, %156 : vector<1x1xf32>
    %159 = arith.mulf %121, %158 : vector<1x1xf32>
    %c2_64 = arith.constant 2 : index
    %c0_65 = arith.constant 0 : index
    %160 = vector.load %arg4[%c2_64, %c0_65] : memref<8x128xf32, #tpu.memory_space<vmem>>, vector<1x128xf32>
    %161 = vector.shape_cast %160 : vector<1x128xf32> to vector<128xf32>
    %162 = vector.shape_cast %161 : vector<128xf32> to vector<1x128xf32>
    %163 = vector.broadcast %159 : vector<1x1xf32> to vector<1x128xf32>
    %164 = arith.mulf %163, %162 : vector<1x128xf32>
    %165 = arith.addf %111, %164 : vector<1x128xf32>
    %c3 = arith.constant 3 : index
    %c0_66 = arith.constant 0 : index
    %166 = vector.load %arg2[%c3, %c0_66] : memref<8x128xf32, #tpu.memory_space<vmem>>, vector<1x128xf32>
    %167 = vector.shape_cast %166 : vector<1x128xf32> to vector<128xf32>
    %168 = vector.shape_cast %167 : vector<128xf32> to vector<1x128xf32>
    %169 = arith.mulf %2, %168 : vector<1x128xf32>
    %cst_67 = arith.constant dense<0.000000e+00> : vector<1xf32>
    %170 = vector.multi_reduction <add>, %169, %cst_67 [1] : vector<1x128xf32> to vector<1xf32>
    %171 = vector.shape_cast %170 : vector<1xf32> to vector<1x1xf32>
    %c0_68 = arith.constant 0 : index
    %c3_69 = arith.constant 3 : index
    %172 = vector.load %arg3[%c0_68, %c3_69] : memref<1x8xf32, #tpu.memory_space<vmem>>, vector<1x1xf32>
    %173 = arith.addf %171, %172 : vector<1x1xf32>
    %cst_70 = arith.constant 5.000000e-01 : f32
    %174 = vector.broadcast %cst_70 : f32 to vector<1x1xf32>
    %175 = arith.mulf %174, %173 : vector<1x1xf32>
    %cst_71 = arith.constant 0.707106769 : f32
    %176 = vector.broadcast %cst_71 : f32 to vector<1x1xf32>
    %177 = arith.mulf %173, %176 : vector<1x1xf32>
    %cst_72 = arith.constant 0.000000e+00 : f32
    %178 = vector.broadcast %cst_72 : f32 to vector<1x1xf32>
    %179 = arith.cmpf oge, %177, %178 : vector<1x1xf32>
    %cst_73 = arith.constant 1.000000e+00 : f32
    %cst_74 = arith.constant -1.000000e+00 : f32
    %180 = vector.broadcast %cst_73 : f32 to vector<1x1xf32>
    %181 = vector.broadcast %cst_74 : f32 to vector<1x1xf32>
    %182 = arith.select %179, %180, %181 : vector<1x1xi1>, vector<1x1xf32>
    %183 = math.absf %177 : vector<1x1xf32>
    %cst_75 = arith.constant 0.327591091 : f32
    %184 = vector.broadcast %cst_75 : f32 to vector<1x1xf32>
    %185 = arith.mulf %184, %183 : vector<1x1xf32>
    %cst_76 = arith.constant 1.000000e+00 : f32
    %186 = vector.broadcast %cst_76 : f32 to vector<1x1xf32>
    %187 = arith.addf %186, %185 : vector<1x1xf32>
    %188 = tpu.reciprocal %187 : vector<1x1xf32> -> vector<1x1xf32>
    %cst_77 = arith.constant 1.06140542 : f32
    %189 = vector.broadcast %cst_77 : f32 to vector<1x1xf32>
    %190 = arith.mulf %189, %188 : vector<1x1xf32>
    %cst_78 = arith.constant -1.45315206 : f32
    %191 = vector.broadcast %cst_78 : f32 to vector<1x1xf32>
    %192 = arith.addf %190, %191 : vector<1x1xf32>
    %193 = arith.mulf %192, %188 : vector<1x1xf32>
    %cst_79 = arith.constant 1.42141378 : f32
    %194 = vector.broadcast %cst_79 : f32 to vector<1x1xf32>
    %195 = arith.addf %193, %194 : vector<1x1xf32>
    %196 = arith.mulf %195, %188 : vector<1x1xf32>
    %cst_80 = arith.constant -0.284496725 : f32
    %197 = vector.broadcast %cst_80 : f32 to vector<1x1xf32>
    %198 = arith.addf %196, %197 : vector<1x1xf32>
    %199 = arith.mulf %198, %188 : vector<1x1xf32>
    %cst_81 = arith.constant 0.254829586 : f32
    %200 = vector.broadcast %cst_81 : f32 to vector<1x1xf32>
    %201 = arith.addf %199, %200 : vector<1x1xf32>
    %202 = arith.mulf %201, %188 : vector<1x1xf32>
    %cst_82 = arith.constant 0.000000e+00 : f32
    %203 = vector.broadcast %cst_82 : f32 to vector<1x1xf32>
    %204 = arith.subf %203, %183 : vector<1x1xf32>
    %205 = arith.mulf %204, %183 : vector<1x1xf32>
    %206 = math.exp %205 : vector<1x1xf32>
    %207 = arith.mulf %202, %206 : vector<1x1xf32>
    %cst_83 = arith.constant 1.000000e+00 : f32
    %208 = vector.broadcast %cst_83 : f32 to vector<1x1xf32>
    %209 = arith.subf %208, %207 : vector<1x1xf32>
    %210 = arith.mulf %182, %209 : vector<1x1xf32>
    %cst_84 = arith.constant 1.000000e+00 : f32
    %211 = vector.broadcast %cst_84 : f32 to vector<1x1xf32>
    %212 = arith.addf %211, %210 : vector<1x1xf32>
    %213 = arith.mulf %175, %212 : vector<1x1xf32>
    %c3_85 = arith.constant 3 : index
    %c0_86 = arith.constant 0 : index
    %214 = vector.load %arg4[%c3_85, %c0_86] : memref<8x128xf32, #tpu.memory_space<vmem>>, vector<1x128xf32>
    %215 = vector.shape_cast %214 : vector<1x128xf32> to vector<128xf32>
    %216 = vector.shape_cast %215 : vector<128xf32> to vector<1x128xf32>
    %217 = vector.broadcast %213 : vector<1x1xf32> to vector<1x128xf32>
    %218 = arith.mulf %217, %216 : vector<1x128xf32>
    %219 = arith.addf %165, %218 : vector<1x128xf32>
    %c4 = arith.constant 4 : index
    %c0_87 = arith.constant 0 : index
    %220 = vector.load %arg2[%c4, %c0_87] : memref<8x128xf32, #tpu.memory_space<vmem>>, vector<1x128xf32>
    %221 = vector.shape_cast %220 : vector<1x128xf32> to vector<128xf32>
    %222 = vector.shape_cast %221 : vector<128xf32> to vector<1x128xf32>
    %223 = arith.mulf %2, %222 : vector<1x128xf32>
    %cst_88 = arith.constant dense<0.000000e+00> : vector<1xf32>
    %224 = vector.multi_reduction <add>, %223, %cst_88 [1] : vector<1x128xf32> to vector<1xf32>
    %225 = vector.shape_cast %224 : vector<1xf32> to vector<1x1xf32>
    %c0_89 = arith.constant 0 : index
    %c4_90 = arith.constant 4 : index
    %226 = vector.load %arg3[%c0_89, %c4_90] : memref<1x8xf32, #tpu.memory_space<vmem>>, vector<1x1xf32>
    %227 = arith.addf %225, %226 : vector<1x1xf32>
    %cst_91 = arith.constant 5.000000e-01 : f32
    %228 = vector.broadcast %cst_91 : f32 to vector<1x1xf32>
    %229 = arith.mulf %228, %227 : vector<1x1xf32>
    %cst_92 = arith.constant 0.707106769 : f32
    %230 = vector.broadcast %cst_92 : f32 to vector<1x1xf32>
    %231 = arith.mulf %227, %230 : vector<1x1xf32>
    %cst_93 = arith.constant 0.000000e+00 : f32
    %232 = vector.broadcast %cst_93 : f32 to vector<1x1xf32>
    %233 = arith.cmpf oge, %231, %232 : vector<1x1xf32>
    %cst_94 = arith.constant 1.000000e+00 : f32
    %cst_95 = arith.constant -1.000000e+00 : f32
    %234 = vector.broadcast %cst_94 : f32 to vector<1x1xf32>
    %235 = vector.broadcast %cst_95 : f32 to vector<1x1xf32>
    %236 = arith.select %233, %234, %235 : vector<1x1xi1>, vector<1x1xf32>
    %237 = math.absf %231 : vector<1x1xf32>
    %cst_96 = arith.constant 0.327591091 : f32
    %238 = vector.broadcast %cst_96 : f32 to vector<1x1xf32>
    %239 = arith.mulf %238, %237 : vector<1x1xf32>
    %cst_97 = arith.constant 1.000000e+00 : f32
    %240 = vector.broadcast %cst_97 : f32 to vector<1x1xf32>
    %241 = arith.addf %240, %239 : vector<1x1xf32>
    %242 = tpu.reciprocal %241 : vector<1x1xf32> -> vector<1x1xf32>
    %cst_98 = arith.constant 1.06140542 : f32
    %243 = vector.broadcast %cst_98 : f32 to vector<1x1xf32>
    %244 = arith.mulf %243, %242 : vector<1x1xf32>
    %cst_99 = arith.constant -1.45315206 : f32
    %245 = vector.broadcast %cst_99 : f32 to vector<1x1xf32>
    %246 = arith.addf %244, %245 : vector<1x1xf32>
    %247 = arith.mulf %246, %242 : vector<1x1xf32>
    %cst_100 = arith.constant 1.42141378 : f32
    %248 = vector.broadcast %cst_100 : f32 to vector<1x1xf32>
    %249 = arith.addf %247, %248 : vector<1x1xf32>
    %250 = arith.mulf %249, %242 : vector<1x1xf32>
    %cst_101 = arith.constant -0.284496725 : f32
    %251 = vector.broadcast %cst_101 : f32 to vector<1x1xf32>
    %252 = arith.addf %250, %251 : vector<1x1xf32>
    %253 = arith.mulf %252, %242 : vector<1x1xf32>
    %cst_102 = arith.constant 0.254829586 : f32
    %254 = vector.broadcast %cst_102 : f32 to vector<1x1xf32>
    %255 = arith.addf %253, %254 : vector<1x1xf32>
    %256 = arith.mulf %255, %242 : vector<1x1xf32>
    %cst_103 = arith.constant 0.000000e+00 : f32
    %257 = vector.broadcast %cst_103 : f32 to vector<1x1xf32>
    %258 = arith.subf %257, %237 : vector<1x1xf32>
    %259 = arith.mulf %258, %237 : vector<1x1xf32>
    %260 = math.exp %259 : vector<1x1xf32>
    %261 = arith.mulf %256, %260 : vector<1x1xf32>
    %cst_104 = arith.constant 1.000000e+00 : f32
    %262 = vector.broadcast %cst_104 : f32 to vector<1x1xf32>
    %263 = arith.subf %262, %261 : vector<1x1xf32>
    %264 = arith.mulf %236, %263 : vector<1x1xf32>
    %cst_105 = arith.constant 1.000000e+00 : f32
    %265 = vector.broadcast %cst_105 : f32 to vector<1x1xf32>
    %266 = arith.addf %265, %264 : vector<1x1xf32>
    %267 = arith.mulf %229, %266 : vector<1x1xf32>
    %c4_106 = arith.constant 4 : index
    %c0_107 = arith.constant 0 : index
    %268 = vector.load %arg4[%c4_106, %c0_107] : memref<8x128xf32, #tpu.memory_space<vmem>>, vector<1x128xf32>
    %269 = vector.shape_cast %268 : vector<1x128xf32> to vector<128xf32>
    %270 = vector.shape_cast %269 : vector<128xf32> to vector<1x128xf32>
    %271 = vector.broadcast %267 : vector<1x1xf32> to vector<1x128xf32>
    %272 = arith.mulf %271, %270 : vector<1x128xf32>
    %273 = arith.addf %219, %272 : vector<1x128xf32>
    %c5 = arith.constant 5 : index
    %c0_108 = arith.constant 0 : index
    %274 = vector.load %arg2[%c5, %c0_108] : memref<8x128xf32, #tpu.memory_space<vmem>>, vector<1x128xf32>
    %275 = vector.shape_cast %274 : vector<1x128xf32> to vector<128xf32>
    %276 = vector.shape_cast %275 : vector<128xf32> to vector<1x128xf32>
    %277 = arith.mulf %2, %276 : vector<1x128xf32>
    %cst_109 = arith.constant dense<0.000000e+00> : vector<1xf32>
    %278 = vector.multi_reduction <add>, %277, %cst_109 [1] : vector<1x128xf32> to vector<1xf32>
    %279 = vector.shape_cast %278 : vector<1xf32> to vector<1x1xf32>
    %c0_110 = arith.constant 0 : index
    %c5_111 = arith.constant 5 : index
    %280 = vector.load %arg3[%c0_110, %c5_111] : memref<1x8xf32, #tpu.memory_space<vmem>>, vector<1x1xf32>
    %281 = arith.addf %279, %280 : vector<1x1xf32>
    %cst_112 = arith.constant 5.000000e-01 : f32
    %282 = vector.broadcast %cst_112 : f32 to vector<1x1xf32>
    %283 = arith.mulf %282, %281 : vector<1x1xf32>
    %cst_113 = arith.constant 0.707106769 : f32
    %284 = vector.broadcast %cst_113 : f32 to vector<1x1xf32>
    %285 = arith.mulf %281, %284 : vector<1x1xf32>
    %cst_114 = arith.constant 0.000000e+00 : f32
    %286 = vector.broadcast %cst_114 : f32 to vector<1x1xf32>
    %287 = arith.cmpf oge, %285, %286 : vector<1x1xf32>
    %cst_115 = arith.constant 1.000000e+00 : f32
    %cst_116 = arith.constant -1.000000e+00 : f32
    %288 = vector.broadcast %cst_115 : f32 to vector<1x1xf32>
    %289 = vector.broadcast %cst_116 : f32 to vector<1x1xf32>
    %290 = arith.select %287, %288, %289 : vector<1x1xi1>, vector<1x1xf32>
    %291 = math.absf %285 : vector<1x1xf32>
    %cst_117 = arith.constant 0.327591091 : f32
    %292 = vector.broadcast %cst_117 : f32 to vector<1x1xf32>
    %293 = arith.mulf %292, %291 : vector<1x1xf32>
    %cst_118 = arith.constant 1.000000e+00 : f32
    %294 = vector.broadcast %cst_118 : f32 to vector<1x1xf32>
    %295 = arith.addf %294, %293 : vector<1x1xf32>
    %296 = tpu.reciprocal %295 : vector<1x1xf32> -> vector<1x1xf32>
    %cst_119 = arith.constant 1.06140542 : f32
    %297 = vector.broadcast %cst_119 : f32 to vector<1x1xf32>
    %298 = arith.mulf %297, %296 : vector<1x1xf32>
    %cst_120 = arith.constant -1.45315206 : f32
    %299 = vector.broadcast %cst_120 : f32 to vector<1x1xf32>
    %300 = arith.addf %298, %299 : vector<1x1xf32>
    %301 = arith.mulf %300, %296 : vector<1x1xf32>
    %cst_121 = arith.constant 1.42141378 : f32
    %302 = vector.broadcast %cst_121 : f32 to vector<1x1xf32>
    %303 = arith.addf %301, %302 : vector<1x1xf32>
    %304 = arith.mulf %303, %296 : vector<1x1xf32>
    %cst_122 = arith.constant -0.284496725 : f32
    %305 = vector.broadcast %cst_122 : f32 to vector<1x1xf32>
    %306 = arith.addf %304, %305 : vector<1x1xf32>
    %307 = arith.mulf %306, %296 : vector<1x1xf32>
    %cst_123 = arith.constant 0.254829586 : f32
    %308 = vector.broadcast %cst_123 : f32 to vector<1x1xf32>
    %309 = arith.addf %307, %308 : vector<1x1xf32>
    %310 = arith.mulf %309, %296 : vector<1x1xf32>
    %cst_124 = arith.constant 0.000000e+00 : f32
    %311 = vector.broadcast %cst_124 : f32 to vector<1x1xf32>
    %312 = arith.subf %311, %291 : vector<1x1xf32>
    %313 = arith.mulf %312, %291 : vector<1x1xf32>
    %314 = math.exp %313 : vector<1x1xf32>
    %315 = arith.mulf %310, %314 : vector<1x1xf32>
    %cst_125 = arith.constant 1.000000e+00 : f32
    %316 = vector.broadcast %cst_125 : f32 to vector<1x1xf32>
    %317 = arith.subf %316, %315 : vector<1x1xf32>
    %318 = arith.mulf %290, %317 : vector<1x1xf32>
    %cst_126 = arith.constant 1.000000e+00 : f32
    %319 = vector.broadcast %cst_126 : f32 to vector<1x1xf32>
    %320 = arith.addf %319, %318 : vector<1x1xf32>
    %321 = arith.mulf %283, %320 : vector<1x1xf32>
    %c5_127 = arith.constant 5 : index
    %c0_128 = arith.constant 0 : index
    %322 = vector.load %arg4[%c5_127, %c0_128] : memref<8x128xf32, #tpu.memory_space<vmem>>, vector<1x128xf32>
    %323 = vector.shape_cast %322 : vector<1x128xf32> to vector<128xf32>
    %324 = vector.shape_cast %323 : vector<128xf32> to vector<1x128xf32>
    %325 = vector.broadcast %321 : vector<1x1xf32> to vector<1x128xf32>
    %326 = arith.mulf %325, %324 : vector<1x128xf32>
    %327 = arith.addf %273, %326 : vector<1x128xf32>
    %c6 = arith.constant 6 : index
    %c0_129 = arith.constant 0 : index
    %328 = vector.load %arg2[%c6, %c0_129] : memref<8x128xf32, #tpu.memory_space<vmem>>, vector<1x128xf32>
    %329 = vector.shape_cast %328 : vector<1x128xf32> to vector<128xf32>
    %330 = vector.shape_cast %329 : vector<128xf32> to vector<1x128xf32>
    %331 = arith.mulf %2, %330 : vector<1x128xf32>
    %cst_130 = arith.constant dense<0.000000e+00> : vector<1xf32>
    %332 = vector.multi_reduction <add>, %331, %cst_130 [1] : vector<1x128xf32> to vector<1xf32>
    %333 = vector.shape_cast %332 : vector<1xf32> to vector<1x1xf32>
    %c0_131 = arith.constant 0 : index
    %c6_132 = arith.constant 6 : index
    %334 = vector.load %arg3[%c0_131, %c6_132] : memref<1x8xf32, #tpu.memory_space<vmem>>, vector<1x1xf32>
    %335 = arith.addf %333, %334 : vector<1x1xf32>
    %cst_133 = arith.constant 5.000000e-01 : f32
    %336 = vector.broadcast %cst_133 : f32 to vector<1x1xf32>
    %337 = arith.mulf %336, %335 : vector<1x1xf32>
    %cst_134 = arith.constant 0.707106769 : f32
    %338 = vector.broadcast %cst_134 : f32 to vector<1x1xf32>
    %339 = arith.mulf %335, %338 : vector<1x1xf32>
    %cst_135 = arith.constant 0.000000e+00 : f32
    %340 = vector.broadcast %cst_135 : f32 to vector<1x1xf32>
    %341 = arith.cmpf oge, %339, %340 : vector<1x1xf32>
    %cst_136 = arith.constant 1.000000e+00 : f32
    %cst_137 = arith.constant -1.000000e+00 : f32
    %342 = vector.broadcast %cst_136 : f32 to vector<1x1xf32>
    %343 = vector.broadcast %cst_137 : f32 to vector<1x1xf32>
    %344 = arith.select %341, %342, %343 : vector<1x1xi1>, vector<1x1xf32>
    %345 = math.absf %339 : vector<1x1xf32>
    %cst_138 = arith.constant 0.327591091 : f32
    %346 = vector.broadcast %cst_138 : f32 to vector<1x1xf32>
    %347 = arith.mulf %346, %345 : vector<1x1xf32>
    %cst_139 = arith.constant 1.000000e+00 : f32
    %348 = vector.broadcast %cst_139 : f32 to vector<1x1xf32>
    %349 = arith.addf %348, %347 : vector<1x1xf32>
    %350 = tpu.reciprocal %349 : vector<1x1xf32> -> vector<1x1xf32>
    %cst_140 = arith.constant 1.06140542 : f32
    %351 = vector.broadcast %cst_140 : f32 to vector<1x1xf32>
    %352 = arith.mulf %351, %350 : vector<1x1xf32>
    %cst_141 = arith.constant -1.45315206 : f32
    %353 = vector.broadcast %cst_141 : f32 to vector<1x1xf32>
    %354 = arith.addf %352, %353 : vector<1x1xf32>
    %355 = arith.mulf %354, %350 : vector<1x1xf32>
    %cst_142 = arith.constant 1.42141378 : f32
    %356 = vector.broadcast %cst_142 : f32 to vector<1x1xf32>
    %357 = arith.addf %355, %356 : vector<1x1xf32>
    %358 = arith.mulf %357, %350 : vector<1x1xf32>
    %cst_143 = arith.constant -0.284496725 : f32
    %359 = vector.broadcast %cst_143 : f32 to vector<1x1xf32>
    %360 = arith.addf %358, %359 : vector<1x1xf32>
    %361 = arith.mulf %360, %350 : vector<1x1xf32>
    %cst_144 = arith.constant 0.254829586 : f32
    %362 = vector.broadcast %cst_144 : f32 to vector<1x1xf32>
    %363 = arith.addf %361, %362 : vector<1x1xf32>
    %364 = arith.mulf %363, %350 : vector<1x1xf32>
    %cst_145 = arith.constant 0.000000e+00 : f32
    %365 = vector.broadcast %cst_145 : f32 to vector<1x1xf32>
    %366 = arith.subf %365, %345 : vector<1x1xf32>
    %367 = arith.mulf %366, %345 : vector<1x1xf32>
    %368 = math.exp %367 : vector<1x1xf32>
    %369 = arith.mulf %364, %368 : vector<1x1xf32>
    %cst_146 = arith.constant 1.000000e+00 : f32
    %370 = vector.broadcast %cst_146 : f32 to vector<1x1xf32>
    %371 = arith.subf %370, %369 : vector<1x1xf32>
    %372 = arith.mulf %344, %371 : vector<1x1xf32>
    %cst_147 = arith.constant 1.000000e+00 : f32
    %373 = vector.broadcast %cst_147 : f32 to vector<1x1xf32>
    %374 = arith.addf %373, %372 : vector<1x1xf32>
    %375 = arith.mulf %337, %374 : vector<1x1xf32>
    %c6_148 = arith.constant 6 : index
    %c0_149 = arith.constant 0 : index
    %376 = vector.load %arg4[%c6_148, %c0_149] : memref<8x128xf32, #tpu.memory_space<vmem>>, vector<1x128xf32>
    %377 = vector.shape_cast %376 : vector<1x128xf32> to vector<128xf32>
    %378 = vector.shape_cast %377 : vector<128xf32> to vector<1x128xf32>
    %379 = vector.broadcast %375 : vector<1x1xf32> to vector<1x128xf32>
    %380 = arith.mulf %379, %378 : vector<1x128xf32>
    %381 = arith.addf %327, %380 : vector<1x128xf32>
    %c7 = arith.constant 7 : index
    %c0_150 = arith.constant 0 : index
    %382 = vector.load %arg2[%c7, %c0_150] : memref<8x128xf32, #tpu.memory_space<vmem>>, vector<1x128xf32>
    %383 = vector.shape_cast %382 : vector<1x128xf32> to vector<128xf32>
    %384 = vector.shape_cast %383 : vector<128xf32> to vector<1x128xf32>
    %385 = arith.mulf %2, %384 : vector<1x128xf32>
    %cst_151 = arith.constant dense<0.000000e+00> : vector<1xf32>
    %386 = vector.multi_reduction <add>, %385, %cst_151 [1] : vector<1x128xf32> to vector<1xf32>
    %387 = vector.shape_cast %386 : vector<1xf32> to vector<1x1xf32>
    %c0_152 = arith.constant 0 : index
    %c7_153 = arith.constant 7 : index
    %388 = vector.load %arg3[%c0_152, %c7_153] : memref<1x8xf32, #tpu.memory_space<vmem>>, vector<1x1xf32>
    %389 = arith.addf %387, %388 : vector<1x1xf32>
    %cst_154 = arith.constant 5.000000e-01 : f32
    %390 = vector.broadcast %cst_154 : f32 to vector<1x1xf32>
    %391 = arith.mulf %390, %389 : vector<1x1xf32>
    %cst_155 = arith.constant 0.707106769 : f32
    %392 = vector.broadcast %cst_155 : f32 to vector<1x1xf32>
    %393 = arith.mulf %389, %392 : vector<1x1xf32>
    %cst_156 = arith.constant 0.000000e+00 : f32
    %394 = vector.broadcast %cst_156 : f32 to vector<1x1xf32>
    %395 = arith.cmpf oge, %393, %394 : vector<1x1xf32>
    %cst_157 = arith.constant 1.000000e+00 : f32
    %cst_158 = arith.constant -1.000000e+00 : f32
    %396 = vector.broadcast %cst_157 : f32 to vector<1x1xf32>
    %397 = vector.broadcast %cst_158 : f32 to vector<1x1xf32>
    %398 = arith.select %395, %396, %397 : vector<1x1xi1>, vector<1x1xf32>
    %399 = math.absf %393 : vector<1x1xf32>
    %cst_159 = arith.constant 0.327591091 : f32
    %400 = vector.broadcast %cst_159 : f32 to vector<1x1xf32>
    %401 = arith.mulf %400, %399 : vector<1x1xf32>
    %cst_160 = arith.constant 1.000000e+00 : f32
    %402 = vector.broadcast %cst_160 : f32 to vector<1x1xf32>
    %403 = arith.addf %402, %401 : vector<1x1xf32>
    %404 = tpu.reciprocal %403 : vector<1x1xf32> -> vector<1x1xf32>
    %cst_161 = arith.constant 1.06140542 : f32
    %405 = vector.broadcast %cst_161 : f32 to vector<1x1xf32>
    %406 = arith.mulf %405, %404 : vector<1x1xf32>
    %cst_162 = arith.constant -1.45315206 : f32
    %407 = vector.broadcast %cst_162 : f32 to vector<1x1xf32>
    %408 = arith.addf %406, %407 : vector<1x1xf32>
    %409 = arith.mulf %408, %404 : vector<1x1xf32>
    %cst_163 = arith.constant 1.42141378 : f32
    %410 = vector.broadcast %cst_163 : f32 to vector<1x1xf32>
    %411 = arith.addf %409, %410 : vector<1x1xf32>
    %412 = arith.mulf %411, %404 : vector<1x1xf32>
    %cst_164 = arith.constant -0.284496725 : f32
    %413 = vector.broadcast %cst_164 : f32 to vector<1x1xf32>
    %414 = arith.addf %412, %413 : vector<1x1xf32>
    %415 = arith.mulf %414, %404 : vector<1x1xf32>
    %cst_165 = arith.constant 0.254829586 : f32
    %416 = vector.broadcast %cst_165 : f32 to vector<1x1xf32>
    %417 = arith.addf %415, %416 : vector<1x1xf32>
    %418 = arith.mulf %417, %404 : vector<1x1xf32>
    %cst_166 = arith.constant 0.000000e+00 : f32
    %419 = vector.broadcast %cst_166 : f32 to vector<1x1xf32>
    %420 = arith.subf %419, %399 : vector<1x1xf32>
    %421 = arith.mulf %420, %399 : vector<1x1xf32>
    %422 = math.exp %421 : vector<1x1xf32>
    %423 = arith.mulf %418, %422 : vector<1x1xf32>
    %cst_167 = arith.constant 1.000000e+00 : f32
    %424 = vector.broadcast %cst_167 : f32 to vector<1x1xf32>
    %425 = arith.subf %424, %423 : vector<1x1xf32>
    %426 = arith.mulf %398, %425 : vector<1x1xf32>
    %cst_168 = arith.constant 1.000000e+00 : f32
    %427 = vector.broadcast %cst_168 : f32 to vector<1x1xf32>
    %428 = arith.addf %427, %426 : vector<1x1xf32>
    %429 = arith.mulf %391, %428 : vector<1x1xf32>
    %c7_169 = arith.constant 7 : index
    %c0_170 = arith.constant 0 : index
    %430 = vector.load %arg4[%c7_169, %c0_170] : memref<8x128xf32, #tpu.memory_space<vmem>>, vector<1x128xf32>
    %431 = vector.shape_cast %430 : vector<1x128xf32> to vector<128xf32>
    %432 = vector.shape_cast %431 : vector<128xf32> to vector<1x128xf32>
    %433 = vector.broadcast %429 : vector<1x1xf32> to vector<1x128xf32>
    %434 = arith.mulf %433, %432 : vector<1x128xf32>
    %435 = arith.addf %381, %434 : vector<1x128xf32>
    %c0_171 = arith.constant 0 : index
    %c0_172 = arith.constant 0 : index
    %436 = vector.load %arg5[%c0_171, %c0_172] : memref<1x128xf32, #tpu.memory_space<vmem>>, vector<1x128xf32>
    %437 = arith.addf %435, %436 : vector<1x128xf32>
    %cst_173 = arith.constant 0.000000e+00 : f32
    %438 = vector.broadcast %cst_173 : f32 to vector<1x128xf32>
    %439 = arith.subf %438, %437 : vector<1x128xf32>
    %440 = math.exp %439 : vector<1x128xf32>
    %cst_174 = arith.constant 1.000000e+00 : f32
    %441 = vector.broadcast %cst_174 : f32 to vector<1x128xf32>
    %442 = arith.addf %441, %440 : vector<1x128xf32>
    %443 = tpu.reciprocal %442 : vector<1x128xf32> -> vector<1x128xf32>
    %444 = vector.broadcast %443 : vector<1x128xf32> to vector<256x128xf32>
    %445 = arith.mulf %0, %444 : vector<256x128xf32>
    %c0_175 = arith.constant 0 : index
    %c0_176 = arith.constant 0 : index
    %446 = vector.load %arg6[%c0_175, %c0_176] : memref<256x128xf32, #tpu.memory_space<vmem>>, vector<256x128xf32>
    tpu.vector_store %arg6[%c0_175, %c0_176], %445 {strides = array<i32>} : memref<256x128xf32, #tpu.memory_space<vmem>>, vector<256x128xf32>,
    return
  }
  func.func @transform_0(%arg0: i32) -> (i32, i32) {
    %c0_i32 = arith.constant 0 : i32
    %c0_i32_0 = arith.constant 0 : i32
    return %arg0, %c0_i32 : i32, i32
  }
  func.func @transform_1(%arg0: i32) -> (i32, i32) {
    %c0_i32 = arith.constant 0 : i32
    %c0_i32_0 = arith.constant 0 : i32
    %c0_i32_1 = arith.constant 0 : i32
    return %c0_i32, %c0_i32_0 : i32, i32
  }
  func.func @transform_2(%arg0: i32) -> (i32, i32) {
    %c0_i32 = arith.constant 0 : i32
    %c0_i32_0 = arith.constant 0 : i32
    %c0_i32_1 = arith.constant 0 : i32
    return %c0_i32, %c0_i32_0 : i32, i32
  }
  func.func @transform_3(%arg0: i32) -> (i32, i32) {
    %c0_i32 = arith.constant 0 : i32
    %c0_i32_0 = arith.constant 0 : i32
    %c0_i32_1 = arith.constant 0 : i32
    return %c0_i32, %c0_i32_0 : i32, i32
  }
  func.func @transform_4(%arg0: i32) -> (i32, i32) {
    %c0_i32 = arith.constant 0 : i32
    %c0_i32_0 = arith.constant 0 : i32
    %c0_i32_1 = arith.constant 0 : i32
    return %c0_i32, %c0_i32_0 : i32, i32
  }
  func.func @transform_5(%arg0: i32) -> (i32, i32) {
    %c0_i32 = arith.constant 0 : i32
    %c0_i32_0 = arith.constant 0 : i32
    return %arg0, %c0_i32 : i32, i32
  }
}

</mosaic_0001>

<llo_original>
// kernel: se_forward.1
$region0: #{se_forward.1}
  #allocation0 [shape = 'u32[]', space=smem, size = 0x4, offset = 0x4, fixed_abs, tag = 'smem constant byte address 0x4 - core index']
  #allocation1 [shape = 'u32[144,128]{1,0:T(1,128)}', space=vmem, size = 0x12000, scoped, tag = 'internal scratch']
  %s0 = inlined_call_operand.hbm [shape: f32[512,128], index: 0, kind: input, shape index: {}]
  %s1 = inlined_call_operand.vmem [shape: f32[8,128], index: 1, kind: input, shape index: {}]
  %s2 = inlined_call_operand.vmem [shape: f32[1,8], index: 2, kind: input, shape index: {}]
  %s3 = inlined_call_operand.vmem [shape: f32[8,128], index: 3, kind: input, shape index: {}]
  %s4 = inlined_call_operand.vmem [shape: f32[1,128], index: 4, kind: input, shape index: {}]
  %s5 = inlined_call_operand.hbm [shape: f32[512,128], index: 5, kind: output, shape index: {}]
  %s6 = sld [smem:[#allocation0]]
  $region57: #{se_forward.1} parent=0
    _
  %s8 = ssub.s32 1, %s6
  %s9 = scalar_select 0, %s8, %s6
  $region1: #{se_forward.1} parent=0
    #allocation2 [shape = 'u8[262144]{0}', space=vmem, size = 0x40000, scoped, tag = 'input window, operand 0']
    #allocation3 [shape = 's32[2]{0}', space=sflag, size = 0x8, scoped, tag = 'scoped memory for se_forward.1']
    #allocation4 [shape = 's32[2]{0}', space=sflag, size = 0x8, scoped, tag = 'scoped memory for se_forward.1']
    #allocation5 [shape = 'u8[262144]{0}', space=vmem, size = 0x40000, scoped, tag = 'output window, operand 0']
    %10 = vsyncpa [#allocation3], 0
    %s11 = scalar_lea.sflag [#allocation3], 1
    %12 = vsyncpa %s11, 0
    %13 = vsyncpa [#allocation4], 0
    %s14 = scalar_lea.sflag [#allocation4], 1
    %15 = vsyncpa %s14, 0
    loop: start=0, step=1, limit=4
    $region2: #{se_forward.1} parent=1 // loop_pre_header
      _
    $region3: #{se_forward.1} parent=1 // loop_header
      %s17 = sphi 0, %s21
      %p18 = scmp.ge.s32.totalorder %s17, 4
      %s27 = sphi 0, %s29
      %s30 = sphi 0, %s27
      %s31 = sphi 0, %s30
      %s47 = sphi 0, %s31
      %s51 = sphi 0, %s51
      %s53 = sphi 0, %s51
      %s54 = sphi 0, %s53
      %s68 = sphi 0, %s54
      %s72 = sphi 0, %s72
      %s74 = sphi 0, %s72
      %s75 = sphi 0, %s74
      %s89 = sphi 0, %s75
      %s93 = sphi 0, %s93
      %s95 = sphi 0, %s93
      %s96 = sphi 0, %s95
      %s110 = sphi 0, %s96
      %s114 = sphi 0, %s114
      %s116 = sphi 0, %s114
      %s117 = sphi 0, %s116
      %s131 = sphi 0, %s117
      %s137 = sphi 0, %s139
      %s140 = sphi 0, %s137
      %s141 = sphi 0, %s140
      %s157 = sphi 0, %s141
    $region4: #{se_forward.1} parent=1 // loop_header_branch
      %20 = sbr.rel (%p18) target = $region8
    $region5: #{se_forward.1} parent=1 // loop_body
      %s22 = ssub.s32 %s17, 1
      %s23 = ssub.s32 %s17, 2
      %s24 = sadd.s32 %s17, 1
      %s25 = ssub.s32 %s17, %s24
      %p26 = scmp.eq.s32.totalorder %s25, 0
      %s28 = sadd.s32 %s27, 1
      %s29 = scalar_select %p26, %s27, %s28
      %p32 = pneg %p26
      %p33 = scmp.eq.s32.totalorder %s17, 1
      %p34 = por %p32, %p33
      %p35 = scmp.ne.s32.totalorder %s27, %s30
      %p36 = scmp.eq.s32.totalorder %s17, 0
      %p37 = por %p35, %p36
      %p38 = scmp.ne.s32.totalorder %s27, %s30
      %p39 = scmp.eq.s32.totalorder %s22, 1
      %p40 = por %p38, %p39
      %p41 = scmp.ne.s32.totalorder %s30, %s31
      %p42 = scmp.eq.s32.totalorder %s22, 0
      %p43 = por %p41, %p42
      %p44 = scmp.ne.s32.totalorder %s30, %s31
      %p45 = scmp.eq.s32.totalorder %s23, 1
      %p46 = por %p44, %p45
      %p48 = scmp.ne.s32.totalorder %s31, %s47
      %p49 = scmp.eq.s32.totalorder %s23, 0
      %p50 = por %p48, %p49
      %s52 = sadd.s32 %s51, 1
      %p55 = scmp.eq.s32.totalorder %s17, 1
      %p56 = scmp.ne.s32.totalorder %s51, %s53
      %p57 = scmp.eq.s32.totalorder %s17, 0
      %p58 = por %p56, %p57
      %p59 = scmp.ne.s32.totalorder %s51, %s53
      %p60 = scmp.eq.s32.totalorder %s22, 1
      %p61 = por %p59, %p60
      %p62 = scmp.ne.s32.totalorder %s53, %s54
      %p63 = scmp.eq.s32.totalorder %s22, 0
      %p64 = por %p62, %p63
      %p65 = scmp.ne.s32.totalorder %s53, %s54
      %p66 = scmp.eq.s32.totalorder %s23, 1
      %p67 = por %p65, %p66
      %p69 = scmp.ne.s32.totalorder %s54, %s68
      %p70 = scmp.eq.s32.totalorder %s23, 0
      %p71 = por %p69, %p70
      %s73 = sadd.s32 %s72, 1
      %p76 = scmp.eq.s32.totalorder %s17, 1
      %p77 = scmp.ne.s32.totalorder %s72, %s74
      %p78 = scmp.eq.s32.totalorder %s17, 0
      %p79 = por %p77, %p78
      %p80 = scmp.ne.s32.totalorder %s72, %s74
      %p81 = scmp.eq.s32.totalorder %s22, 1
      %p82 = por %p80, %p81
      %p83 = scmp.ne.s32.totalorder %s74, %s75
      %p84 = scmp.eq.s32.totalorder %s22, 0
      %p85 = por %p83, %p84
      %p86 = scmp.ne.s32.totalorder %s74, %s75
      %p87 = scmp.eq.s32.totalorder %s23, 1
      %p88 = por %p86, %p87
      %p90 = scmp.ne.s32.totalorder %s75, %s89
      %p91 = scmp.eq.s32.totalorder %s23, 0
      %p92 = por %p90, %p91
      %s94 = sadd.s32 %s93, 1
      %p97 = scmp.eq.s32.totalorder %s17, 1
      %p98 = scmp.ne.s32.totalorder %s93, %s95
      %p99 = scmp.eq.s32.totalorder %s17, 0
      %p100 = por %p98, %p99
      %p101 = scmp.ne.s32.totalorder %s93, %s95
      %p102 = scmp.eq.s32.totalorder %s22, 1
      %p103 = por %p101, %p102
      %p104 = scmp.ne.s32.totalorder %s95, %s96
      %p105 = scmp.eq.s32.totalorder %s22, 0
      %p106 = por %p104, %p105
      %p107 = scmp.ne.s32.totalorder %s95, %s96
      %p108 = scmp.eq.s32.totalorder %s23, 1
      %p109 = por %p107, %p108
      %p111 = scmp.ne.s32.totalorder %s96, %s110
      %p112 = scmp.eq.s32.totalorder %s23, 0
      %p113 = por %p111, %p112
      %s115 = sadd.s32 %s114, 1
      %p118 = scmp.eq.s32.totalorder %s17, 1
      %p119 = scmp.ne.s32.totalorder %s114, %s116
      %p120 = scmp.eq.s32.totalorder %s17, 0
      %p121 = por %p119, %p120
      %p122 = scmp.ne.s32.totalorder %s114, %s116
      %p123 = scmp.eq.s32.totalorder %s22, 1
      %p124 = por %p122, %p123
      %p125 = scmp.ne.s32.totalorder %s116, %s117
      %p126 = scmp.eq.s32.totalorder %s22, 0
      %p127 = por %p125, %p126
      %p128 = scmp.ne.s32.totalorder %s116, %s117
      %p129 = scmp.eq.s32.totalorder %s23, 1
      %p130 = por %p128, %p129
      %p132 = scmp.ne.s32.totalorder %s117, %s131
      %p133 = scmp.eq.s32.totalorder %s23, 0
      %p134 = por %p132, %p133
      %s135 = ssub.s32 %s17, %s24
      %p136 = scmp.eq.s32.totalorder %s135, 0
      %s138 = sadd.s32 %s137, 1
      %s139 = scalar_select %p136, %s137, %s138
      %p142 = pneg %p136
      %p143 = scmp.eq.s32.totalorder %s17, 1
      %p144 = por %p142, %p143
      %p145 = scmp.ne.s32.totalorder %s137, %s140
      %p146 = scmp.eq.s32.totalorder %s17, 0
      %p147 = por %p145, %p146
      %p148 = scmp.ne.s32.totalorder %s137, %s140
      %p149 = scmp.eq.s32.totalorder %s22, 1
      %p150 = por %p148, %p149
      %p151 = scmp.ne.s32.totalorder %s140, %s141
      %p152 = scmp.eq.s32.totalorder %s22, 0
      %p153 = por %p151, %p152
      %p154 = scmp.ne.s32.totalorder %s140, %s141
      %p155 = scmp.eq.s32.totalorder %s23, 1
      %p156 = por %p154, %p155
      %p158 = scmp.ne.s32.totalorder %s141, %s157
      %p159 = scmp.eq.s32.totalorder %s23, 0
      %p160 = por %p158, %p159
      %p161 = scmp.le.s32.totalorder 1, %s17
      %p162 = scmp.lt.s32.totalorder %s17, 3
      %p163 = pnand %p161, %p162
      %p164 = pneg %p163
      // Predicated region
      $region9: #{se_forward.1} parent=5 // pred_check
        _
      $region10: #{se_forward.1} parent=5 // pred_check_branch
        %166 = sbr.rel (%p163) target = $region12
      $region11: #{se_forward.1} parent=5 // pred_region
        %s167 = ssub.s32 %s17, 1
        // Predicated region
        $region13: #{se_forward.1} parent=11 // pred_check
          %p168 = pneg %p64
        $region14: #{se_forward.1} parent=11 // pred_check_branch
          %170 = sbr.rel (%p168) target = $region16
        $region15: #{se_forward.1} parent=11 // pred_region
          _
        $region16: #{se_forward.1} parent=11 // pred_fallthru
          _
        // Predicated region
        $region17: #{se_forward.1} parent=11 // pred_check
          %p171 = pneg %p85
        $region18: #{se_forward.1} parent=11 // pred_check_branch
          %173 = sbr.rel (%p171) target = $region20
        $region19: #{se_forward.1} parent=11 // pred_region
          _
        $region20: #{se_forward.1} parent=11 // pred_fallthru
          _
        // Predicated region
        $region21: #{se_forward.1} parent=11 // pred_check
          %p174 = pneg %p106
        $region22: #{se_forward.1} parent=11 // pred_check_branch
          %176 = sbr.rel (%p174) target = $region24
        $region23: #{se_forward.1} parent=11 // pred_region
          _
        $region24: #{se_forward.1} parent=11 // pred_fallthru
          _
        // Predicated region
        $region25: #{se_forward.1} parent=11 // pred_check
          %p177 = pneg %p127
        $region26: #{se_forward.1} parent=11 // pred_check_branch
          %179 = sbr.rel (%p177) target = $region28
        $region27: #{se_forward.1} parent=11 // pred_region
          _
        $region28: #{se_forward.1} parent=11 // pred_fallthru
          _
      $region12: #{se_forward.1} parent=5 // pred_fallthru
        _
      %p180 = scmp.lt.s32.totalorder %s17, 2
      // Predicated region
      $region29: #{se_forward.1} parent=5 // pred_check
        %p181 = pneg %p180
      $region30: #{se_forward.1} parent=5 // pred_check_branch
        %183 = sbr.rel (%p181) target = $region32
      $region31: #{se_forward.1} parent=5 // pred_region
        // Predicated region
        $region33: #{se_forward.1} parent=31 // pred_check
          %p184 = pneg %p37
        $region34: #{se_forward.1} parent=31 // pred_check_branch
          %186 = sbr.rel (%p184) target = $region36
        $region35: #{se_forward.1} parent=31 // pred_region
          %s187 = sand.u32 %s27, 1
          %s188 = scalar_lea.sflag [#allocation3], %s187
          %s189 = sand.u32 %s27, 1
          %s190 = smul.addr %s189, 256
          %s191 = scalar_lea.vmem [#allocation2], %s190
          %s192 = smul.u32 32, %s17
          %s194 = ssub.s32 4096, 4096
          %195 = vsyncadd %s188, %s194
          %s196 = smul.addr %s192, 128
          %s197 = scalar_lea.hbm %s0, %s196
          %s198 = sshll.u32 %s191, 4
          %s199 = int_to_ptr.vmem [resolvable:$true] %s198
          %204 = dma.hbm_to_vmem [thread:$0]  %s197, 4096, %s199, %s188, 128, 128, 8
        $region36: #{se_forward.1} parent=31 // pred_fallthru
          _
      $region32: #{se_forward.1} parent=5 // pred_fallthru
        _
      %p205 = scmp.le.s32.totalorder 1, %s17
      %p206 = scmp.lt.s32.totalorder %s17, 3
      %p207 = pnand %p205, %p206
      %p208 = pneg %p207
      // Predicated region
      $region37: #{se_forward.1} parent=5 // pred_check
        _
      $region38: #{se_forward.1} parent=5 // pred_check_branch
        %210 = sbr.rel (%p207) target = $region40
      $region39: #{se_forward.1} parent=5 // pred_region
        %s211 = ssub.s32 %s17, 1
        %s212 = sand.u32 %s30, 1
        %s213 = scalar_lea.sflag [#allocation3], %s212
        %s214 = sand.u32 %s30, 1
        %s215 = smul.addr %s214, 256
        %s216 = scalar_lea.vmem [#allocation2], %s215
        // Predicated region
        $region41: #{se_forward.1} parent=39 // pred_check
          %p217 = pneg %p43
        $region42: #{se_forward.1} parent=39 // pred_check_branch
          %219 = sbr.rel (%p217) target = $region44
        $region43: #{se_forward.1} parent=39 // pred_region
          %220 = dma.done %s213, 4096
        $region44: #{se_forward.1} parent=39 // pred_fallthru
          _
        %s221 = sand.u32 %s30, 1
        %s222 = scalar_lea.sflag [#allocation3], %s221
        %s223 = sand.u32 %s30, 1
        %s224 = smul.addr %s223, 256
        %s225 = scalar_lea.vmem [#allocation2], %s224
        %p226 = pneg %p43
        %p227 = pneg %p40
        %p228 = pneg %p64
        %p229 = pneg %p61
        %p230 = pneg %p85
        %p231 = pneg %p82
        %p232 = pneg %p106
        %p233 = pneg %p103
        %p234 = pneg %p127
        %p235 = pneg %p124
        %p236 = pneg %p153
        %p237 = pneg %p150
        %s238 = sand.u32 %s140, 1
        %s239 = scalar_lea.sflag [#allocation4], %s238
        %s240 = sand.u32 %s140, 1
        %s241 = smul.addr %s240, 256
        %s242 = scalar_lea.vmem [#allocation5], %s241
        %s243 = smul.u32 32, %s22
        %s244 = smul.u32 32, %s22
        %v245 = vld [vmem:[%s216] sm:$0xff]
        %v246 = vld [vmem:[%s216 + $0x8] sm:$0xff]
        %v247 = vld [vmem:[%s216 + $0x10] sm:$0xff]
        %v248 = vld [vmem:[%s216 + $0x18] sm:$0xff]
        %v249 = vld [vmem:[%s216 + $0x20] sm:$0xff]
        %v250 = vld [vmem:[%s216 + $0x28] sm:$0xff]
        %v251 = vld [vmem:[%s216 + $0x30] sm:$0xff]
        %v252 = vld [vmem:[%s216 + $0x38] sm:$0xff]
        %v253 = vld [vmem:[%s216 + $0x40] sm:$0xff]
        %v254 = vld [vmem:[%s216 + $0x48] sm:$0xff]
        %v255 = vld [vmem:[%s216 + $0x50] sm:$0xff]
        %v256 = vld [vmem:[%s216 + $0x58] sm:$0xff]
        %v257 = vld [vmem:[%s216 + $0x60] sm:$0xff]
        %v258 = vld [vmem:[%s216 + $0x68] sm:$0xff]
        %v259 = vld [vmem:[%s216 + $0x70] sm:$0xff]
        %v260 = vld [vmem:[%s216 + $0x78] sm:$0xff]
        %v261 = vld [vmem:[%s216 + $0x80] sm:$0xff]
        %v262 = vld [vmem:[%s216 + $0x88] sm:$0xff]
        %v263 = vld [vmem:[%s216 + $0x90] sm:$0xff]
        %v264 = vld [vmem:[%s216 + $0x98] sm:$0xff]
        %v265 = vld [vmem:[%s216 + $0xa0] sm:$0xff]
        %v266 = vld [vmem:[%s216 + $0xa8] sm:$0xff]
        %v267 = vld [vmem:[%s216 + $0xb0] sm:$0xff]
        %v268 = vld [vmem:[%s216 + $0xb8] sm:$0xff]
        %v269 = vld [vmem:[%s216 + $0xc0] sm:$0xff]
        %v270 = vld [vmem:[%s216 + $0xc8] sm:$0xff]
        %v271 = vld [vmem:[%s216 + $0xd0] sm:$0xff]
        %v272 = vld [vmem:[%s216 + $0xd8] sm:$0xff]
        %v273 = vld [vmem:[%s216 + $0xe0] sm:$0xff]
        %v274 = vld [vmem:[%s216 + $0xe8] sm:$0xff]
        %v275 = vld [vmem:[%s216 + $0xf0] sm:$0xff]
        %v276 = vld [vmem:[%s216 + $0xf8] sm:$0xff]
        %v277 = vadd.f32 %v245, %v246
        %v278 = vadd.f32 %v277, %v247
        %v279 = vadd.f32 %v278, %v248
        %v280 = vadd.f32 %v279, %v249
        %v281 = vadd.f32 %v280, %v250
        %v282 = vadd.f32 %v281, %v251
        %v283 = vadd.f32 %v282, %v252
        %v284 = vadd.f32 %v283, %v253
        %v285 = vadd.f32 %v284, %v254
        %v286 = vadd.f32 %v285, %v255
        %v287 = vadd.f32 %v286, %v256
        %v288 = vadd.f32 %v287, %v257
        %v289 = vadd.f32 %v288, %v258
        %v290 = vadd.f32 %v289, %v259
        %v291 = vadd.f32 %v290, %v260
        %v292 = vadd.f32 %v291, %v261
        %v293 = vadd.f32 %v292, %v262
        %v294 = vadd.f32 %v293, %v263
        %v295 = vadd.f32 %v294, %v264
        %v296 = vadd.f32 %v295, %v265
        %v297 = vadd.f32 %v296, %v266
        %v298 = vadd.f32 %v297, %v267
        %v299 = vadd.f32 %v298, %v268
        %v300 = vadd.f32 %v299, %v269
        %v301 = vadd.f32 %v300, %v270
        %v302 = vadd.f32 %v301, %v271
        %v303 = vadd.f32 %v302, %v272
        %v304 = vadd.f32 %v303, %v273
        %v305 = vadd.f32 %v304, %v274
        %v306 = vadd.f32 %v305, %v275
        %v307 = vadd.f32 %v306, %v276
        %v308 = vrot.slane %v307, 4
        %v309 = vadd.f32 %v307, %v308
        %v310 = vrot.slane %v309, 2
        %v311 = vadd.f32 %v309, %v310
        %v312 = vrot.slane %v311, 1
        %v313 = vadd.f32 %v311, %v312
        %v314 = vld [vmem:[%s1] sm:$0x1]
        %v315 = vmul.f32 %v313, %v314
        %vm316 = vcmask 1040384
        %v317 = vsel %vm316, %v315, 0.0
        %318 = vadd.xlane.f32.xlu0 %v317
        %v319 = vpop.xlane.xlu0 %318
        %v320 = vld [vmem:[%s2] sm:$0x1]
        %v321 = vadd.f32 %v319, %v320
        %v322 = vmul.f32 %v321, 0.5
        %v323 = vmul.f32 %v321, 0.70710677
        %vm324 = vcmp.ge.f32.partialorder %v323, 0.0
        %v325 = vsel %vm324, 1.0, -1.0
        %v326 = vand.u32 2147483647, %v323
        %v327 = vmul.f32 %v326, 0.3275911
        %v328 = vadd.f32 %v327, 1.0
        %v329 = vrcp.pop %v328
        %v330 = vmul.f32 %v329, 1.0614054
        %v331 = vadd.f32 %v330, -1.4531521
        %v332 = vmul.f32 %v331, %v329
        %v333 = vadd.f32 %v332, 1.4214138
        %v334 = vmul.f32 %v333, %v329
        %v335 = vadd.f32 %v334, -0.28449672
        %v336 = vmul.f32 %v335, %v329
        %v337 = vadd.f32 %v336, 0.2548296
        %v338 = vmul.f32 %v337, %v329
        %v339 = vsub.f32 0.0, %v326
        %v340 = vmul.f32 %v339, %v326
        %v341 = vmul.f32 %v340, 1.442695
        %v342 = vpow.pop %v341
        %v343 = vmul.f32 %v338, %v342
        %v344 = vsub.f32 1.0, %v343
        %v345 = vmul.f32 %v325, %v344
        %v346 = vadd.f32 %v345, 1.0
        %v347 = vmul.f32 %v322, %v346
        %v348 = vld [vmem:[%s3] sm:$0x1]
        %350 = vset.pattern.permute.xlu0 0
        %351 = vperm.xlu0 %350, %v347
        %v352 = vpop.permute.xlu0 %351
        %v354 = vmul.f32 %v352, %v348
        %v355 = vadd.f32 %v354, 0.0
        %v356 = vld [vmem:[%s1 + $0x1] sm:$0x1]
        %v357 = vmul.f32 %v313, %v356
        %v358 = vsel %vm316, %v357, 0.0
        %359 = vadd.xlane.f32.xlu0 %v358
        %v360 = vpop.xlane.xlu0 %359
        %v362 = vlaneseq
        %v363 = vshrl.u32 %v362, 7
        %v364 = vsub.s32 0, %v363
        %v365 = vrot.slane %v320, %v364
        %366 = vrot.lane.b32.xlu0 %v365, 127
        %v367 = vpop.permute.xlu0 %366
        %v369 = vadd.f32 %v360, %v367
        %v370 = vmul.f32 %v369, 0.5
        %v371 = vmul.f32 %v369, 0.70710677
        %vm372 = vcmp.ge.f32.partialorder %v371, 0.0
        %v373 = vsel %vm372, 1.0, -1.0
        %v374 = vand.u32 2147483647, %v371
        %v375 = vmul.f32 %v374, 0.3275911
        %v376 = vadd.f32 %v375, 1.0
        %v377 = vrcp.pop %v376
        %v378 = vmul.f32 %v377, 1.0614054
        %v379 = vadd.f32 %v378, -1.4531521
        %v380 = vmul.f32 %v379, %v377
        %v381 = vadd.f32 %v380, 1.4214138
        %v382 = vmul.f32 %v381, %v377
        %v383 = vadd.f32 %v382, -0.28449672
        %v384 = vmul.f32 %v383, %v377
        %v385 = vadd.f32 %v384, 0.2548296
        %v386 = vmul.f32 %v385, %v377
        %v387 = vsub.f32 0.0, %v374
        %v388 = vmul.f32 %v387, %v374
        %v389 = vmul.f32 %v388, 1.442695
        %v390 = vpow.pop %v389
        %v391 = vmul.f32 %v386, %v390
        %v392 = vsub.f32 1.0, %v391
        %v393 = vmul.f32 %v373, %v392
        %v394 = vadd.f32 %v393, 1.0
        %v395 = vmul.f32 %v370, %v394
        %v396 = vld [vmem:[%s3 + $0x1] sm:$0x1]
        %398 = vset.pattern.permute.xlu0 0
        %399 = vperm.xlu0 %398, %v395
        %v400 = vpop.permute.xlu0 %399
        %v402 = vmul.f32 %v400, %v396
        %v403 = vadd.f32 %v355, %v402
        %v404 = vld [vmem:[%s1 + $0x2] sm:$0x1]
        %v405 = vmul.f32 %v313, %v404
        %v406 = vsel %vm316, %v405, 0.0
        %407 = vadd.xlane.f32.xlu0 %v406
        %v408 = vpop.xlane.xlu0 %407
        %409 = vrot.lane.b32.xlu0 %v365, 126
        %v410 = vpop.permute.xlu0 %409
        %v412 = vadd.f32 %v408, %v410
        %v413 = vmul.f32 %v412, 0.5
        %v414 = vmul.f32 %v412, 0.70710677
        %vm415 = vcmp.ge.f32.partialorder %v414, 0.0
        %v416 = vsel %vm415, 1.0, -1.0
        %v417 = vand.u32 2147483647, %v414
        %v418 = vmul.f32 %v417, 0.3275911
        %v419 = vadd.f32 %v418, 1.0
        %v420 = vrcp.pop %v419
        %v421 = vmul.f32 %v420, 1.0614054
        %v422 = vadd.f32 %v421, -1.4531521
        %v423 = vmul.f32 %v422, %v420
        %v424 = vadd.f32 %v423, 1.4214138
        %v425 = vmul.f32 %v424, %v420
        %v426 = vadd.f32 %v425, -0.28449672
        %v427 = vmul.f32 %v426, %v420
        %v428 = vadd.f32 %v427, 0.2548296
        %v429 = vmul.f32 %v428, %v420
        %v430 = vsub.f32 0.0, %v417
        %v431 = vmul.f32 %v430, %v417
        %v432 = vmul.f32 %v431, 1.442695
        %v433 = vpow.pop %v432
        %v434 = vmul.f32 %v429, %v433
        %v435 = vsub.f32 1.0, %v434
        %v436 = vmul.f32 %v416, %v435
        %v437 = vadd.f32 %v436, 1.0
        %v438 = vmul.f32 %v413, %v437
        %v439 = vld [vmem:[%s3 + $0x2] sm:$0x1]
        %441 = vset.pattern.permute.xlu0 0
        %442 = vperm.xlu0 %441, %v438
        %v443 = vpop.permute.xlu0 %442
        %v445 = vmul.f32 %v443, %v439
        %v446 = vadd.f32 %v403, %v445
        %v447 = vld [vmem:[%s1 + $0x3] sm:$0x1]
        %v448 = vmul.f32 %v313, %v447
        %v449 = vsel %vm316, %v448, 0.0
        %450 = vadd.xlane.f32.xlu0 %v449
        %v451 = vpop.xlane.xlu0 %450
        %452 = vrot.lane.b32.xlu0 %v365, 125
        %v453 = vpop.permute.xlu0 %452
        %v455 = vadd.f32 %v451, %v453
        %v456 = vmul.f32 %v455, 0.5
        %v457 = vmul.f32 %v455, 0.70710677
        %vm458 = vcmp.ge.f32.partialorder %v457, 0.0
        %v459 = vsel %vm458, 1.0, -1.0
        %v460 = vand.u32 2147483647, %v457
        %v461 = vmul.f32 %v460, 0.3275911
        %v462 = vadd.f32 %v461, 1.0
        %v463 = vrcp.pop %v462
        %v464 = vmul.f32 %v463, 1.0614054
        %v465 = vadd.f32 %v464, -1.4531521
        %v466 = vmul.f32 %v465, %v463
        %v467 = vadd.f32 %v466, 1.4214138
        %v468 = vmul.f32 %v467, %v463
        %v469 = vadd.f32 %v468, -0.28449672
        %v470 = vmul.f32 %v469, %v463
        %v471 = vadd.f32 %v470, 0.2548296
        %v472 = vmul.f32 %v471, %v463
        %v473 = vsub.f32 0.0, %v460
        %v474 = vmul.f32 %v473, %v460
        %v475 = vmul.f32 %v474, 1.442695
        %v476 = vpow.pop %v475
        %v477 = vmul.f32 %v472, %v476
        %v478 = vsub.f32 1.0, %v477
        %v479 = vmul.f32 %v459, %v478
        %v480 = vadd.f32 %v479, 1.0
        %v481 = vmul.f32 %v456, %v480
        %v482 = vld [vmem:[%s3 + $0x3] sm:$0x1]
        %484 = vset.pattern.permute.xlu0 0
        %485 = vperm.xlu0 %484, %v481
        %v486 = vpop.permute.xlu0 %485
        %v488 = vmul.f32 %v486, %v482
        %v489 = vadd.f32 %v446, %v488
        %v490 = vld [vmem:[%s1 + $0x4] sm:$0x1]
        %v491 = vmul.f32 %v313, %v490
        %v492 = vsel %vm316, %v491, 0.0
        %493 = vadd.xlane.f32.xlu0 %v492
        %v494 = vpop.xlane.xlu0 %493
        %495 = vrot.lane.b32.xlu0 %v365, 124
        %v496 = vpop.permute.xlu0 %495
        %v498 = vadd.f32 %v494, %v496
        %v499 = vmul.f32 %v498, 0.5
        %v500 = vmul.f32 %v498, 0.70710677
        %vm501 = vcmp.ge.f32.partialorder %v500, 0.0
        %v502 = vsel %vm501, 1.0, -1.0
        %v503 = vand.u32 2147483647, %v500
        %v504 = vmul.f32 %v503, 0.3275911
        %v505 = vadd.f32 %v504, 1.0
        %v506 = vrcp.pop %v505
        %v507 = vmul.f32 %v506, 1.0614054
        %v508 = vadd.f32 %v507, -1.4531521
        %v509 = vmul.f32 %v508, %v506
        %v510 = vadd.f32 %v509, 1.4214138
        %v511 = vmul.f32 %v510, %v506
        %v512 = vadd.f32 %v511, -0.28449672
        %v513 = vmul.f32 %v512, %v506
        %v514 = vadd.f32 %v513, 0.2548296
        %v515 = vmul.f32 %v514, %v506
        %v516 = vsub.f32 0.0, %v503
        %v517 = vmul.f32 %v516, %v503
        %v518 = vmul.f32 %v517, 1.442695
        %v519 = vpow.pop %v518
        %v520 = vmul.f32 %v515, %v519
        %v521 = vsub.f32 1.0, %v520
        %v522 = vmul.f32 %v502, %v521
        %v523 = vadd.f32 %v522, 1.0
        %v524 = vmul.f32 %v499, %v523
        %v525 = vld [vmem:[%s3 + $0x4] sm:$0x1]
        %527 = vset.pattern.permute.xlu0 0
        %528 = vperm.xlu0 %527, %v524
        %v529 = vpop.permute.xlu0 %528
        %v531 = vmul.f32 %v529, %v525
        %v532 = vadd.f32 %v489, %v531
        %v533 = vld [vmem:[%s1 + $0x5] sm:$0x1]
        %v534 = vmul.f32 %v313, %v533
        %v535 = vsel %vm316, %v534, 0.0
        %536 = vadd.xlane.f32.xlu0 %v535
        %v537 = vpop.xlane.xlu0 %536
        %538 = vrot.lane.b32.xlu0 %v365, 123
        %v539 = vpop.permute.xlu0 %538
        %v541 = vadd.f32 %v537, %v539
        %v542 = vmul.f32 %v541, 0.5
        %v543 = vmul.f32 %v541, 0.70710677
        %vm544 = vcmp.ge.f32.partialorder %v543, 0.0
        %v545 = vsel %vm544, 1.0, -1.0
        %v546 = vand.u32 2147483647, %v543
        %v547 = vmul.f32 %v546, 0.3275911
        %v548 = vadd.f32 %v547, 1.0
        %v549 = vrcp.pop %v548
        %v550 = vmul.f32 %v549, 1.0614054
        %v551 = vadd.f32 %v550, -1.4531521
        %v552 = vmul.f32 %v551, %v549
        %v553 = vadd.f32 %v552, 1.4214138
        %v554 = vmul.f32 %v553, %v549
        %v555 = vadd.f32 %v554, -0.28449672
        %v556 = vmul.f32 %v555, %v549
        %v557 = vadd.f32 %v556, 0.2548296
        %v558 = vmul.f32 %v557, %v549
        %v559 = vsub.f32 0.0, %v546
        %v560 = vmul.f32 %v559, %v546
        %v561 = vmul.f32 %v560, 1.442695
        %v562 = vpow.pop %v561
        %v563 = vmul.f32 %v558, %v562
        %v564 = vsub.f32 1.0, %v563
        %v565 = vmul.f32 %v545, %v564
        %v566 = vadd.f32 %v565, 1.0
        %v567 = vmul.f32 %v542, %v566
        %v568 = vld [vmem:[%s3 + $0x5] sm:$0x1]
        %570 = vset.pattern.permute.xlu0 0
        %571 = vperm.xlu0 %570, %v567
        %v572 = vpop.permute.xlu0 %571
        %v574 = vmul.f32 %v572, %v568
        %v575 = vadd.f32 %v532, %v574
        %v576 = vld [vmem:[%s1 + $0x6] sm:$0x1]
        %v577 = vmul.f32 %v313, %v576
        %v578 = vsel %vm316, %v577, 0.0
        %579 = vadd.xlane.f32.xlu0 %v578
        %v580 = vpop.xlane.xlu0 %579
        %581 = vrot.lane.b32.xlu0 %v365, 122
        %v582 = vpop.permute.xlu0 %581
        %v584 = vadd.f32 %v580, %v582
        %v585 = vmul.f32 %v584, 0.5
        %v586 = vmul.f32 %v584, 0.70710677
        %vm587 = vcmp.ge.f32.partialorder %v586, 0.0
        %v588 = vsel %vm587, 1.0, -1.0
        %v589 = vand.u32 2147483647, %v586
        %v590 = vmul.f32 %v589, 0.3275911
        %v591 = vadd.f32 %v590, 1.0
        %v592 = vrcp.pop %v591
        %v593 = vmul.f32 %v592, 1.0614054
        %v594 = vadd.f32 %v593, -1.4531521
        %v595 = vmul.f32 %v594, %v592
        %v596 = vadd.f32 %v595, 1.4214138
        %v597 = vmul.f32 %v596, %v592
        %v598 = vadd.f32 %v597, -0.28449672
        %v599 = vmul.f32 %v598, %v592
        %v600 = vadd.f32 %v599, 0.2548296
        %v601 = vmul.f32 %v600, %v592
        %v602 = vsub.f32 0.0, %v589
        %v603 = vmul.f32 %v602, %v589
        %v604 = vmul.f32 %v603, 1.442695
        %v605 = vpow.pop %v604
        %v606 = vmul.f32 %v601, %v605
        %v607 = vsub.f32 1.0, %v606
        %v608 = vmul.f32 %v588, %v607
        %v609 = vadd.f32 %v608, 1.0
        %v610 = vmul.f32 %v585, %v609
        %v611 = vld [vmem:[%s3 + $0x6] sm:$0x1]
        %613 = vset.pattern.permute.xlu0 0
        %614 = vperm.xlu0 %613, %v610
        %v615 = vpop.permute.xlu0 %614
        %v617 = vmul.f32 %v615, %v611
        %v618 = vadd.f32 %v575, %v617
        %v619 = vld [vmem:[%s1 + $0x7] sm:$0x1]
        %v620 = vmul.f32 %v313, %v619
        %v621 = vsel %vm316, %v620, 0.0
        %622 = vadd.xlane.f32.xlu0 %v621
        %v623 = vpop.xlane.xlu0 %622
        %624 = vrot.lane.b32.xlu0 %v365, 121
        %v625 = vpop.permute.xlu0 %624
        %v627 = vadd.f32 %v623, %v625
        %v628 = vmul.f32 %v627, 0.5
        %v629 = vmul.f32 %v627, 0.70710677
        %vm630 = vcmp.ge.f32.partialorder %v629, 0.0
        %v631 = vsel %vm630, 1.0, -1.0
        %v632 = vand.u32 2147483647, %v629
        %v633 = vmul.f32 %v632, 0.3275911
        %v634 = vadd.f32 %v633, 1.0
        %v635 = vrcp.pop %v634
        %v636 = vmul.f32 %v635, 1.0614054
        %v637 = vadd.f32 %v636, -1.4531521
        %v638 = vmul.f32 %v637, %v635
        %v639 = vadd.f32 %v638, 1.4214138
        %v640 = vmul.f32 %v639, %v635
        %v641 = vadd.f32 %v640, -0.28449672
        %v642 = vmul.f32 %v641, %v635
        %v643 = vadd.f32 %v642, 0.2548296
        %v644 = vmul.f32 %v643, %v635
        %v645 = vsub.f32 0.0, %v632
        %v646 = vmul.f32 %v645, %v632
        %v647 = vmul.f32 %v646, 1.442695
        %v648 = vpow.pop %v647
        %v649 = vmul.f32 %v644, %v648
        %v650 = vsub.f32 1.0, %v649
        %v651 = vmul.f32 %v631, %v650
        %v652 = vadd.f32 %v651, 1.0
        %v653 = vmul.f32 %v628, %v652
        %v654 = vld [vmem:[%s3 + $0x7] sm:$0x1]
        %656 = vset.pattern.permute.xlu0 0
        %657 = vperm.xlu0 %656, %v653
        %v658 = vpop.permute.xlu0 %657
        %v660 = vmul.f32 %v658, %v654
        %v661 = vadd.f32 %v618, %v660
        %v662 = vld [vmem:[%s4] sm:$0x1]
        %v663 = vadd.f32 %v661, %v662
        %v664 = vsub.f32 0.0, %v663
        %v665 = vmul.f32 %v664, 1.442695
        %v666 = vpow.pop %v665
        %v667 = vadd.f32 %v666, 1.0
        %v668 = vrcp.pop %v667
        %v669 = vlaneseq
        %v670 = vshrl.u32 %v669, 7
        %v671 = vsub.s32 0, %v670
        %v672 = vrot.slane %v668, %v671
        %v673 = vmul.f32 %v245, %v672
        %v674 = vmul.f32 %v246, %v672
        %v675 = vmul.f32 %v247, %v672
        %v676 = vmul.f32 %v248, %v672
        %v677 = vmul.f32 %v249, %v672
        %v678 = vmul.f32 %v250, %v672
        %v679 = vmul.f32 %v251, %v672
        %v680 = vmul.f32 %v252, %v672
        %v681 = vmul.f32 %v253, %v672
        %v682 = vmul.f32 %v254, %v672
        %v683 = vmul.f32 %v255, %v672
        %v684 = vmul.f32 %v256, %v672
        %v685 = vmul.f32 %v257, %v672
        %v686 = vmul.f32 %v258, %v672
        %v687 = vmul.f32 %v259, %v672
        %v688 = vmul.f32 %v260, %v672
        %v689 = vmul.f32 %v261, %v672
        %v690 = vmul.f32 %v262, %v672
        %v691 = vmul.f32 %v263, %v672
        %v692 = vmul.f32 %v264, %v672
        %v693 = vmul.f32 %v265, %v672
        %v694 = vmul.f32 %v266, %v672
        %v695 = vmul.f32 %v267, %v672
        %v696 = vmul.f32 %v268, %v672
        %v697 = vmul.f32 %v269, %v672
        %v698 = vmul.f32 %v270, %v672
        %v699 = vmul.f32 %v271, %v672
        %v700 = vmul.f32 %v272, %v672
        %v701 = vmul.f32 %v273, %v672
        %v702 = vmul.f32 %v274, %v672
        %v703 = vmul.f32 %v275, %v672
        %v704 = vmul.f32 %v276, %v672
        %705 = vst [vmem:[%s242] sm:$0xff] %v673
        %706 = vst [vmem:[%s242 + $0x8] sm:$0xff] %v674
        %707 = vst [vmem:[%s242 + $0x10] sm:$0xff] %v675
        %708 = vst [vmem:[%s242 + $0x18] sm:$0xff] %v676
        %709 = vst [vmem:[%s242 + $0x20] sm:$0xff] %v677
        %710 = vst [vmem:[%s242 + $0x28] sm:$0xff] %v678
        %711 = vst [vmem:[%s242 + $0x30] sm:$0xff] %v679
        %712 = vst [vmem:[%s242 + $0x38] sm:$0xff] %v680
        %713 = vst [vmem:[%s242 + $0x40] sm:$0xff] %v681
        %714 = vst [vmem:[%s242 + $0x48] sm:$0xff] %v682
        %715 = vst [vmem:[%s242 + $0x50] sm:$0xff] %v683
        %716 = vst [vmem:[%s242 + $0x58] sm:$0xff] %v684
        %717 = vst [vmem:[%s242 + $0x60] sm:$0xff] %v685
        %718 = vst [vmem:[%s242 + $0x68] sm:$0xff] %v686
        %719 = vst [vmem:[%s242 + $0x70] sm:$0xff] %v687
        %720 = vst [vmem:[%s242 + $0x78] sm:$0xff] %v688
        %721 = vst [vmem:[%s242 + $0x80] sm:$0xff] %v689
        %722 = vst [vmem:[%s242 + $0x88] sm:$0xff] %v690
        %723 = vst [vmem:[%s242 + $0x90] sm:$0xff] %v691
        %724 = vst [vmem:[%s242 + $0x98] sm:$0xff] %v692
        %725 = vst [vmem:[%s242 + $0xa0] sm:$0xff] %v693
        %726 = vst [vmem:[%s242 + $0xa8] sm:$0xff] %v694
        %727 = vst [vmem:[%s242 + $0xb0] sm:$0xff] %v695
        %728 = vst [vmem:[%s242 + $0xb8] sm:$0xff] %v696
        %729 = vst [vmem:[%s242 + $0xc0] sm:$0xff] %v697
        %730 = vst [vmem:[%s242 + $0xc8] sm:$0xff] %v698
        %731 = vst [vmem:[%s242 + $0xd0] sm:$0xff] %v699
        %732 = vst [vmem:[%s242 + $0xd8] sm:$0xff] %v700
        %733 = vst [vmem:[%s242 + $0xe0] sm:$0xff] %v701
        %734 = vst [vmem:[%s242 + $0xe8] sm:$0xff] %v702
        %735 = vst [vmem:[%s242 + $0xf0] sm:$0xff] %v703
        %736 = vst [vmem:[%s242 + $0xf8] sm:$0xff] %v704
        %s737 = sand.u32 %s140, 1
        %s738 = scalar_lea.sflag [#allocation4], %s737
        %s739 = sand.u32 %s140, 1
        %s740 = smul.addr %s739, 256
        %s741 = scalar_lea.vmem [#allocation5], %s740
        // Predicated region
        $region45: #{se_forward.1} parent=39 // pred_check
          %p742 = pneg %p150
        $region46: #{se_forward.1} parent=39 // pred_check_branch
          %744 = sbr.rel (%p742) target = $region48
        $region47: #{se_forward.1} parent=39 // pred_region
          %s745 = smul.u32 32, %s22
          %s747 = ssub.s32 4096, 4096
          %748 = vsyncadd %s738, %s747
          %s749 = smul.addr %s745, 128
          %s750 = scalar_lea.hbm %s5, %s749
          %s751 = sshll.u32 %s741, 4
          %s752 = int_to_ptr.vmem [resolvable:$true] %s751
          %757 = dma.vmem_to_hbm [thread:$0]  %s752, 4096, %s750, %s738, 128, 128, 8
        $region48: #{se_forward.1} parent=39 // pred_fallthru
          _
      $region40: #{se_forward.1} parent=5 // pred_fallthru
        _
      %p758 = scmp.le.s32.totalorder 2, %s17
      // Predicated region
      $region49: #{se_forward.1} parent=5 // pred_check
        %p759 = pneg %p758
      $region50: #{se_forward.1} parent=5 // pred_check_branch
        %761 = sbr.rel (%p759) target = $region52
      $region51: #{se_forward.1} parent=5 // pred_region
        %s762 = ssub.s32 %s17, 2
        // Predicated region
        $region53: #{se_forward.1} parent=51 // pred_check
          %p763 = pneg %p156
        $region54: #{se_forward.1} parent=51 // pred_check_branch
          %765 = sbr.rel (%p763) target = $region56
        $region55: #{se_forward.1} parent=51 // pred_region
          %s766 = sand.u32 %s141, 1
          %s767 = scalar_lea.sflag [#allocation4], %s766
          %s768 = sand.u32 %s141, 1
          %s769 = smul.addr %s768, 256
          %s770 = scalar_lea.vmem [#allocation5], %s769
          %771 = dma.done %s767, 4096
        $region56: #{se_forward.1} parent=51 // pred_fallthru
          _
      $region52: #{se_forward.1} parent=5 // pred_fallthru
        _
    $region6: #{se_forward.1} parent=1 // loop_footer
      %s21 = sadd.s32 1, %s17
    $region7: #{se_forward.1} parent=1 // loop_footer_branch
      %16 = sbr.rel target = $region3
    $region8: #{se_forward.1} parent=1 // loop_exit
      _
    %772 = vsyncpa [#allocation3], 1
    %s773 = scalar_lea.sflag [#allocation3], 1
    %774 = vsyncpa %s773, 1
    %775 = vsyncpa [#allocation4], 1
    %s776 = scalar_lea.sflag [#allocation4], 1
    %777 = vsyncpa %s776, 1

</llo_original>
